<compile_context>
chip_gen: v6e
topology: v6e:2x2x1
jax: 0.10.0
libtpu: 0.0.40
codegen_flags: <defaults>
</compile_context>

<pallas_src>
import functools

import jax
import jax.numpy as jnp
from jax.experimental import pallas as pl
from jax.experimental.pallas import tpu as pltpu


def lstm_tagger_kernel(ids_ref, emb_ref, wih_ref, whh_ref, b_ref,
                       wtag_ref, btag_ref, o_ref, *, seq_len, block_b):
    T, Bb = seq_len, block_b
    TB = T * Bb
    VPAD, E = emb_ref.shape
    H = whh_ref.shape[0]
    bf16 = jnp.bfloat16

    # ---- 1) Embedding gather as a one-hot MXU matmul (no scratch, no OOB hazard:
    #         ids outside [0, VPAD) simply produce a zero one-hot row).
    ids_col = ids_ref[...]                                               # [TB, 1] int32
    vocab_iota = jax.lax.broadcasted_iota(jnp.int32, (TB, VPAD), 1)
    one_hot = jnp.where(vocab_iota == ids_col, 1.0, 0.0).astype(bf16)    # [TB, VPAD]
    x = jnp.dot(one_hot, emb_ref[...].astype(bf16),
                preferred_element_type=jnp.float32)                      # [TB, E] time-major

    # ---- 2) Input projection for every (sentence, timestep) pair in ONE MXU pass.
    #         Combined bias (b_ih + b_hh) added once here (hoisted out of the recurrence).
    gx_all = jnp.dot(x.astype(bf16), wih_ref[...].astype(bf16),
                     preferred_element_type=jnp.float32) + b_ref[...]    # [TB, 4H]

    # ---- 3) Batched recurrence over this block's Bb sentences (unrolled over short T).
    whh_bf = whh_ref[...].astype(bf16)                                   # hoisted load
    h = jnp.zeros((Bb, H), jnp.float32)
    c = jnp.zeros((Bb, H), jnp.float32)
    hs = []
    for t in range(T):
        gates = gx_all[t * Bb:(t + 1) * Bb, :] + jnp.dot(
            h.astype(bf16), whh_bf, preferred_element_type=jnp.float32)  # [Bb, 4H]
        # Fused nonlinearities over the full 128-lane vreg: 2 EUP tanh per step
        # (sigmoid in tanh form -> no exp / no divide on the serial chain).
        sig = 0.5 * (1.0 + jnp.tanh(0.5 * gates))
        th = jnp.tanh(gates)
        i_g = sig[:, 0 * H:1 * H]                                        # input gate
        f_g = sig[:, 1 * H:2 * H]                                        # forget gate
        g_g = th[:, 2 * H:3 * H]                                         # cell candidate
        o_g = sig[:, 3 * H:4 * H]                                        # output gate
        c = f_g * c + i_g * g_g
        h = o_g * jnp.tanh(c)
        hs.append(h)                                                     # stays in registers
    hs_all = jnp.concatenate(hs, axis=0)                                 # [TB, H] time-major

    # ---- 4) Tag head + log_softmax. Padded tag lanes are already poisoned via the bias
    #         (-1e30 host-side), so no iota/select is needed here.
    logits = jnp.dot(hs_all.astype(bf16), wtag_ref[...].astype(bf16),
                     preferred_element_type=jnp.float32) + btag_ref[...]  # [TB, TAGP]
    m = jnp.max(logits, axis=-1, keepdims=True)
    lse = m + jnp.log(jnp.sum(jnp.exp(logits - m), axis=-1, keepdims=True))
    o_ref[...] = logits - lse   # lane-dense [TB, 128] unmasked store; wrapper un-scrambles


def lstm_tagger_forward(ids, emb, wih_t, whh_t, b_gates, wtag_pad, btag_pad,
                        *, tagset_size, block_b=8):
    """ids: [B, T] int32 -> log-probs [B, T, tagset_size] (each sentence independent)."""
    B, T = ids.shape
    V, E = emb.shape
    H = whh_t.shape[0]
    TAGP = wtag_pad.shape[1]
    assert B % block_b == 0, "batch must be a multiple of block_b"
    nb = B // block_b
    TB = T * block_b

    # Pad the vocab axis to a lane multiple (one-hot contraction dim).
    VPAD = max(128, pl.cdiv(V, 128) * 128)
    emb_pad = jnp.zeros((VPAD, E), jnp.float32).at[:V, :].set(emb)

    # Time-major ids per block, laid out as a column vector: row t*block_b + s  <-  (s, t).
    ids_tm = (ids.astype(jnp.int32)
                 .reshape(nb, block_b, T)
                 .transpose(0, 2, 1)
                 .reshape(nb * TB, 1))

    flops = (2 * B * T * VPAD * E            # one-hot gather matmul
             + 2 * B * T * E * 4 * H         # input projection
             + 2 * B * T * H * 4 * H         # recurrence
             + 2 * B * T * H * TAGP)         # tag head
    transcendentals = B * T * (2 * 4 * H + H) + B * T * TAGP + B * T
    bytes_accessed = 4 * (ids_tm.size + emb_pad.size + wih_t.size + whh_t.size
                          + b_gates.size + wtag_pad.size + btag_pad.size
                          + nb * TB * TAGP)

    kernel = functools.partial(lstm_tagger_kernel, seq_len=T, block_b=block_b)
    out_tm = pl.pallas_call(
        kernel,
        out_shape=jax.ShapeDtypeStruct((nb * TB, TAGP), jnp.float32),
        grid=(nb,),
        in_specs=[
            pl.BlockSpec((TB, 1), lambda b: (b, 0)),          # token ids (time-major col)
            pl.BlockSpec((VPAD, E), lambda b: (0, 0)),        # padded embedding table
            pl.BlockSpec((E, 4 * H), lambda b: (0, 0)),       # W_ih^T
            pl.BlockSpec((H, 4 * H), lambda b: (0, 0)),       # W_hh^T
            pl.BlockSpec((1, 4 * H), lambda b: (0, 0)),       # b_ih + b_hh
            pl.BlockSpec((H, TAGP), lambda b: (0, 0)),        # W_tag^T (zero-padded)
            pl.BlockSpec((1, TAGP), lambda b: (0, 0)),        # b_tag (padding poisoned)
        ],
        out_specs=pl.BlockSpec((TB, TAGP), lambda b: (b, 0)),
        compiler_params=pltpu.CompilerParams(dimension_semantics=("parallel",)),
        cost_estimate=pl.CostEstimate(flops=flops,
                                      transcendentals=transcendentals,
                                      bytes_accessed=bytes_accessed),
    )(ids_tm, emb_pad, wih_t, whh_t, b_gates, wtag_pad, btag_pad)

    # Un-scramble (time-major within block -> [B, T, TAGP]) and drop tag padding.
    out = (out_tm.reshape(nb, T, block_b, TAGP)
                 .transpose(0, 2, 1, 3)
                 .reshape(B, T, TAGP))
    return out[:, :, :tagset_size]


def reference_forward(ids, emb, wih_t, whh_t, b_gates, wtag_pad, btag_pad, *, tagset_size):
    """Pure-JAX reference with identical math (PyTorch LSTM gate order i,f,g,o),
    mirroring the kernel's bf16 matmul inputs and tanh-form sigmoid."""
    H = whh_t.shape[0]
    bf16 = jnp.bfloat16
    wih_bf = wih_t.astype(bf16)
    whh_bf = whh_t.astype(bf16)
    wtag_bf = wtag_pad[:, :tagset_size].astype(bf16)
    btag = btag_pad[0, :tagset_size]

    def one_sentence(sent_ids):
        x = jnp.take(emb, sent_ids, axis=0).astype(bf16)                       # [T, E]
        gx = jnp.dot(x, wih_bf, preferred_element_type=jnp.float32) + b_gates  # [T, 4H]

        def step(carry, gx_t):
            h, c = carry
            gates = gx_t[None, :] + jnp.dot(h.astype(bf16), whh_bf,
                                            preferred_element_type=jnp.float32)
            sig = 0.5 * (1.0 + jnp.tanh(0.5 * gates))
            th = jnp.tanh(gates)
            i_g = sig[:, 0 * H:1 * H]
            f_g = sig[:, 1 * H:2 * H]
            g_g = th[:, 2 * H:3 * H]
            o_g = sig[:, 3 * H:4 * H]
            c = f_g * c + i_g * g_g
            h = o_g * jnp.tanh(c)
            return (h, c), h[0]

        init = (jnp.zeros((1, H), jnp.float32), jnp.zeros((1, H), jnp.float32))
        _, hs = jax.lax.scan(step, init, gx)                                   # [T, H]
        logits = jnp.dot(hs.astype(bf16), wtag_bf,
                         preferred_element_type=jnp.float32) + btag
        return jax.nn.log_softmax(logits, axis=-1)

    return jax.vmap(one_sentence)(ids)                                         # [B, T, TAGS]


def init_params(key, vocab_size, embedding_dim, hidden_dim, tagset_size, tag_pad):
    """Deterministic synthetic parameters matching LSTMTagger shapes (pre-transposed)."""
    ks = jax.random.split(key, 7)
    emb = jax.random.normal(ks[0], (vocab_size, embedding_dim), jnp.float32)   # Embedding ~ N(0,1)
    bound = 1.0 / jnp.sqrt(hidden_dim)   # PyTorch LSTM/Linear init bound
    wih_t = jax.random.uniform(ks[1], (embedding_dim, 4 * hidden_dim), jnp.float32, -bound, bound)
    whh_t = jax.random.uniform(ks[2], (hidden_dim, 4 * hidden_dim), jnp.float32, -bound, bound)
    b_ih = jax.random.uniform(ks[3], (1, 4 * hidden_dim), jnp.float32, -bound, bound)
    b_hh = jax.random.uniform(ks[4], (1, 4 * hidden_dim), jnp.float32, -bound, bound)
    b_gates = b_ih + b_hh                # LSTM adds both biases; combined host-side
    wtag = jax.random.uniform(ks[5], (hidden_dim, tagset_size), jnp.float32, -bound, bound)
    btag = jax.random.uniform(ks[6], (1, tagset_size), jnp.float32, -bound, bound)
    # Zero-pad the tag head to a lane-dense 128-wide output; poison padded bias lanes so
    # the kernel needs no explicit masking before log_softmax.
    wtag_pad = jnp.zeros((hidden_dim, tag_pad), jnp.float32).at[:, :tagset_size].set(wtag)
    btag_pad = jnp.full((1, tag_pad), -1e30, jnp.float32).at[:, :tagset_size].set(btag[0])
    return emb, wih_t, whh_t, b_gates, wtag_pad, btag_pad


if __name__ == "__main__":
    key = jax.random.PRNGKey(0)
    k_ids, k_p = jax.random.split(key)

    SEQ, VOCAB, EMB, HID, TAGS, TAG_PAD = 8, 16, 32, 32, 8, 128   # 4*HID = 128 (lane-dense)
    BATCH, BLOCK_B = 16, 8                                        # 2 grid steps, parallel axis

    ids = jax.random.randint(k_ids, (BATCH, SEQ), 0, VOCAB, dtype=jnp.int32)   # the sentences
    params = init_params(k_p, VOCAB, EMB, HID, TAGS, TAG_PAD)

    out = lstm_tagger_forward(ids, *params, tagset_size=TAGS, block_b=BLOCK_B)
    out = jax.block_until_ready(out)

    ref = reference_forward(ids, *params, tagset_size=TAGS)
    assert out.shape == (BATCH, SEQ, TAGS)
    # log_softmax rows must exponentiate-and-sum to 1, and match the pure-JAX reference.
    assert jnp.allclose(jnp.sum(jnp.exp(out), axis=-1), 1.0, atol=1e-4)
    assert jnp.allclose(out, ref, atol=2e-3, rtol=2e-3)

    print("KERNEL_OK")
</pallas_src>

<mosaic_0001>
module attributes {stable_mosaic.version = 11 : i64} {
  func.func @lstm_tagger_kernel(%arg0: i32, %arg1: memref<64x1xi32, #tpu.memory_space<vmem>>, %arg2: memref<128x32xf32, #tpu.memory_space<vmem>>, %arg3: memref<32x128xf32, #tpu.memory_space<vmem>>, %arg4: memref<32x128xf32, #tpu.memory_space<vmem>>, %arg5: memref<1x128xf32, #tpu.memory_space<vmem>>, %arg6: memref<32x128xf32, #tpu.memory_space<vmem>>, %arg7: memref<1x128xf32, #tpu.memory_space<vmem>>, %arg8: memref<64x128xf32, #tpu.memory_space<vmem>>) attributes {dimension_semantics = [#tpu.dimension_semantics<parallel>], iteration_bounds = array<i64: 2>, scalar_prefetch = 0 : i64, scratch_operands = 0 : i64, tpu.core_type = #tpu.core_type<tc>, window_params = [{transform_indices = @transform_0, window_bounds = array<i64: 64, 1>}, {pipeline_mode = #tpu.pipeline_mode<synchronous>, transform_indices = @transform_1, window_bounds = array<i64: 128, 32>}, {pipeline_mode = #tpu.pipeline_mode<synchronous>, transform_indices = @transform_2, window_bounds = array<i64: 32, 128>}, {pipeline_mode = #tpu.pipeline_mode<synchronous>, transform_indices = @transform_3, window_bounds = array<i64: 32, 128>}, {pipeline_mode = #tpu.pipeline_mode<synchronous>, transform_indices = @transform_4, window_bounds = array<i64: 1, 128>}, {pipeline_mode = #tpu.pipeline_mode<synchronous>, transform_indices = @transform_5, window_bounds = array<i64: 32, 128>}, {pipeline_mode = #tpu.pipeline_mode<synchronous>, transform_indices = @transform_6, window_bounds = array<i64: 1, 128>}, {transform_indices = @transform_7, window_bounds = array<i64: 64, 128>}]} {
    %c0 = arith.constant 0 : index
    %c0_0 = arith.constant 0 : index
    %0 = vector.load %arg1[%c0, %c0_0] : memref<64x1xi32, #tpu.memory_space<vmem>>, vector<64x1xi32>
    %1 = tpu.iota {dimensions = array<i32: 1>} : vector<64x128xi32>
    %2 = vector.broadcast %0 : vector<64x1xi32> to vector<64x128xi32>
    %3 = arith.cmpi eq, %1, %2 : vector<64x128xi32>
    %cst = arith.constant 1.000000e+00 : f32
    %cst_1 = arith.constant 0.000000e+00 : f32
    %4 = vector.broadcast %cst : f32 to vector<64x128xf32>
    %5 = vector.broadcast %cst_1 : f32 to vector<64x128xf32>
    %6 = arith.select %3, %4, %5 : vector<64x128xi1>, vector<64x128xf32>
    %7 = arith.truncf %6 : vector<64x128xf32> to vector<64x128xbf16>
    %c0_2 = arith.constant 0 : index
    %c0_3 = arith.constant 0 : index
    %8 = vector.load %arg2[%c0_2, %c0_3] : memref<128x32xf32, #tpu.memory_space<vmem>>, vector<128x32xf32>
    %9 = arith.truncf %8 : vector<128x32xf32> to vector<128x32xbf16>
    %cst_4 = arith.constant dense<0.000000e+00> : vector<64x32xf32>
    %10 = tpu.matmul %7, %9, %cst_4 {dimension_numbers = #tpu.dot_dimension_numbers<[1], [0], [0], [1], [0, 0, 1, 1], [], []>} : vector<64x128xbf16>, vector<128x32xbf16>, vector<64x32xf32> -> vector<64x32xf32>
    %11 = arith.truncf %10 : vector<64x32xf32> to vector<64x32xbf16>
    %c0_5 = arith.constant 0 : index
    %c0_6 = arith.constant 0 : index
    %12 = vector.load %arg3[%c0_5, %c0_6] : memref<32x128xf32, #tpu.memory_space<vmem>>, vector<32x128xf32>
    %13 = arith.truncf %12 : vector<32x128xf32> to vector<32x128xbf16>
    %cst_7 = arith.constant dense<0.000000e+00> : vector<64x128xf32>
    %14 = tpu.matmul %11, %13, %cst_7 {dimension_numbers = #tpu.dot_dimension_numbers<[1], [0], [0], [1], [0, 0, 1, 1], [], []>} : vector<64x32xbf16>, vector<32x128xbf16>, vector<64x128xf32> -> vector<64x128xf32>
    %c0_8 = arith.constant 0 : index
    %c0_9 = arith.constant 0 : index
    %15 = vector.load %arg5[%c0_8, %c0_9] : memref<1x128xf32, #tpu.memory_space<vmem>>, vector<1x128xf32>
    %16 = vector.broadcast %15 : vector<1x128xf32> to vector<64x128xf32>
    %17 = arith.addf %14, %16 : vector<64x128xf32>
    %c0_10 = arith.constant 0 : index
    %c0_11 = arith.constant 0 : index
    %18 = vector.load %arg4[%c0_10, %c0_11] : memref<32x128xf32, #tpu.memory_space<vmem>>, vector<32x128xf32>
    %19 = arith.truncf %18 : vector<32x128xf32> to vector<32x128xbf16>
    %cst_12 = arith.constant 0.000000e+00 : f32
    %20 = vector.broadcast %cst_12 : f32 to vector<8x32xf32>
    %cst_13 = arith.constant 0.000000e+00 : f32
    %21 = vector.broadcast %cst_13 : f32 to vector<8x32xf32>
    %22 = vector.extract_strided_slice %17 {offsets = [0, 0], sizes = [8, 128], strides = [1, 1]} : vector<64x128xf32> to vector<8x128xf32>
    %23 = arith.truncf %20 : vector<8x32xf32> to vector<8x32xbf16>
    %cst_14 = arith.constant dense<0.000000e+00> : vector<8x128xf32>
    %24 = tpu.matmul %23, %19, %cst_14 {dimension_numbers = #tpu.dot_dimension_numbers<[1], [0], [0], [1], [0, 0, 1, 1], [], []>} : vector<8x32xbf16>, vector<32x128xbf16>, vector<8x128xf32> -> vector<8x128xf32>
    %25 = arith.addf %22, %24 : vector<8x128xf32>
    %cst_15 = arith.constant 5.000000e-01 : f32
    %26 = vector.broadcast %cst_15 : f32 to vector<8x128xf32>
    %27 = arith.mulf %26, %25 : vector<8x128xf32>
    %28 = math.tanh %27 : vector<8x128xf32>
    %cst_16 = arith.constant 1.000000e+00 : f32
    %29 = vector.broadcast %cst_16 : f32 to vector<8x128xf32>
    %30 = arith.addf %29, %28 : vector<8x128xf32>
    %cst_17 = arith.constant 5.000000e-01 : f32
    %31 = vector.broadcast %cst_17 : f32 to vector<8x128xf32>
    %32 = arith.mulf %31, %30 : vector<8x128xf32>
    %33 = math.tanh %25 : vector<8x128xf32>
    %34 = vector.extract_strided_slice %32 {offsets = [0, 0], sizes = [8, 32], strides = [1, 1]} : vector<8x128xf32> to vector<8x32xf32>
    %35 = vector.extract_strided_slice %32 {offsets = [0, 32], sizes = [8, 32], strides = [1, 1]} : vector<8x128xf32> to vector<8x32xf32>
    %36 = vector.extract_strided_slice %33 {offsets = [0, 64], sizes = [8, 32], strides = [1, 1]} : vector<8x128xf32> to vector<8x32xf32>
    %37 = vector.extract_strided_slice %32 {offsets = [0, 96], sizes = [8, 32], strides = [1, 1]} : vector<8x128xf32> to vector<8x32xf32>
    %38 = arith.mulf %35, %21 : vector<8x32xf32>
    %39 = arith.mulf %34, %36 : vector<8x32xf32>
    %40 = arith.addf %38, %39 : vector<8x32xf32>
    %41 = math.tanh %40 : vector<8x32xf32>
    %42 = arith.mulf %37, %41 : vector<8x32xf32>
    %43 = vector.extract_strided_slice %17 {offsets = [8, 0], sizes = [8, 128], strides = [1, 1]} : vector<64x128xf32> to vector<8x128xf32>
    %44 = arith.truncf %42 : vector<8x32xf32> to vector<8x32xbf16>
    %cst_18 = arith.constant dense<0.000000e+00> : vector<8x128xf32>
    %45 = tpu.matmul %44, %19, %cst_18 {dimension_numbers = #tpu.dot_dimension_numbers<[1], [0], [0], [1], [0, 0, 1, 1], [], []>} : vector<8x32xbf16>, vector<32x128xbf16>, vector<8x128xf32> -> vector<8x128xf32>
    %46 = arith.addf %43, %45 : vector<8x128xf32>
    %cst_19 = arith.constant 5.000000e-01 : f32
    %47 = vector.broadcast %cst_19 : f32 to vector<8x128xf32>
    %48 = arith.mulf %47, %46 : vector<8x128xf32>
    %49 = math.tanh %48 : vector<8x128xf32>
    %cst_20 = arith.constant 1.000000e+00 : f32
    %50 = vector.broadcast %cst_20 : f32 to vector<8x128xf32>
    %51 = arith.addf %50, %49 : vector<8x128xf32>
    %cst_21 = arith.constant 5.000000e-01 : f32
    %52 = vector.broadcast %cst_21 : f32 to vector<8x128xf32>
    %53 = arith.mulf %52, %51 : vector<8x128xf32>
    %54 = math.tanh %46 : vector<8x128xf32>
    %55 = vector.extract_strided_slice %53 {offsets = [0, 0], sizes = [8, 32], strides = [1, 1]} : vector<8x128xf32> to vector<8x32xf32>
    %56 = vector.extract_strided_slice %53 {offsets = [0, 32], sizes = [8, 32], strides = [1, 1]} : vector<8x128xf32> to vector<8x32xf32>
    %57 = vector.extract_strided_slice %54 {offsets = [0, 64], sizes = [8, 32], strides = [1, 1]} : vector<8x128xf32> to vector<8x32xf32>
    %58 = vector.extract_strided_slice %53 {offsets = [0, 96], sizes = [8, 32], strides = [1, 1]} : vector<8x128xf32> to vector<8x32xf32>
    %59 = arith.mulf %56, %40 : vector<8x32xf32>
    %60 = arith.mulf %55, %57 : vector<8x32xf32>
    %61 = arith.addf %59, %60 : vector<8x32xf32>
    %62 = math.tanh %61 : vector<8x32xf32>
    %63 = arith.mulf %58, %62 : vector<8x32xf32>
    %64 = vector.extract_strided_slice %17 {offsets = [16, 0], sizes = [8, 128], strides = [1, 1]} : vector<64x128xf32> to vector<8x128xf32>
    %65 = arith.truncf %63 : vector<8x32xf32> to vector<8x32xbf16>
    %cst_22 = arith.constant dense<0.000000e+00> : vector<8x128xf32>
    %66 = tpu.matmul %65, %19, %cst_22 {dimension_numbers = #tpu.dot_dimension_numbers<[1], [0], [0], [1], [0, 0, 1, 1], [], []>} : vector<8x32xbf16>, vector<32x128xbf16>, vector<8x128xf32> -> vector<8x128xf32>
    %67 = arith.addf %64, %66 : vector<8x128xf32>
    %cst_23 = arith.constant 5.000000e-01 : f32
    %68 = vector.broadcast %cst_23 : f32 to vector<8x128xf32>
    %69 = arith.mulf %68, %67 : vector<8x128xf32>
    %70 = math.tanh %69 : vector<8x128xf32>
    %cst_24 = arith.constant 1.000000e+00 : f32
    %71 = vector.broadcast %cst_24 : f32 to vector<8x128xf32>
    %72 = arith.addf %71, %70 : vector<8x128xf32>
    %cst_25 = arith.constant 5.000000e-01 : f32
    %73 = vector.broadcast %cst_25 : f32 to vector<8x128xf32>
    %74 = arith.mulf %73, %72 : vector<8x128xf32>
    %75 = math.tanh %67 : vector<8x128xf32>
    %76 = vector.extract_strided_slice %74 {offsets = [0, 0], sizes = [8, 32], strides = [1, 1]} : vector<8x128xf32> to vector<8x32xf32>
    %77 = vector.extract_strided_slice %74 {offsets = [0, 32], sizes = [8, 32], strides = [1, 1]} : vector<8x128xf32> to vector<8x32xf32>
    %78 = vector.extract_strided_slice %75 {offsets = [0, 64], sizes = [8, 32], strides = [1, 1]} : vector<8x128xf32> to vector<8x32xf32>
    %79 = vector.extract_strided_slice %74 {offsets = [0, 96], sizes = [8, 32], strides = [1, 1]} : vector<8x128xf32> to vector<8x32xf32>
    %80 = arith.mulf %77, %61 : vector<8x32xf32>
    %81 = arith.mulf %76, %78 : vector<8x32xf32>
    %82 = arith.addf %80, %81 : vector<8x32xf32>
    %83 = math.tanh %82 : vector<8x32xf32>
    %84 = arith.mulf %79, %83 : vector<8x32xf32>
    %85 = vector.extract_strided_slice %17 {offsets = [24, 0], sizes = [8, 128], strides = [1, 1]} : vector<64x128xf32> to vector<8x128xf32>
    %86 = arith.truncf %84 : vector<8x32xf32> to vector<8x32xbf16>
    %cst_26 = arith.constant dense<0.000000e+00> : vector<8x128xf32>
    %87 = tpu.matmul %86, %19, %cst_26 {dimension_numbers = #tpu.dot_dimension_numbers<[1], [0], [0], [1], [0, 0, 1, 1], [], []>} : vector<8x32xbf16>, vector<32x128xbf16>, vector<8x128xf32> -> vector<8x128xf32>
    %88 = arith.addf %85, %87 : vector<8x128xf32>
    %cst_27 = arith.constant 5.000000e-01 : f32
    %89 = vector.broadcast %cst_27 : f32 to vector<8x128xf32>
    %90 = arith.mulf %89, %88 : vector<8x128xf32>
    %91 = math.tanh %90 : vector<8x128xf32>
    %cst_28 = arith.constant 1.000000e+00 : f32
    %92 = vector.broadcast %cst_28 : f32 to vector<8x128xf32>
    %93 = arith.addf %92, %91 : vector<8x128xf32>
    %cst_29 = arith.constant 5.000000e-01 : f32
    %94 = vector.broadcast %cst_29 : f32 to vector<8x128xf32>
    %95 = arith.mulf %94, %93 : vector<8x128xf32>
    %96 = math.tanh %88 : vector<8x128xf32>
    %97 = vector.extract_strided_slice %95 {offsets = [0, 0], sizes = [8, 32], strides = [1, 1]} : vector<8x128xf32> to vector<8x32xf32>
    %98 = vector.extract_strided_slice %95 {offsets = [0, 32], sizes = [8, 32], strides = [1, 1]} : vector<8x128xf32> to vector<8x32xf32>
    %99 = vector.extract_strided_slice %96 {offsets = [0, 64], sizes = [8, 32], strides = [1, 1]} : vector<8x128xf32> to vector<8x32xf32>
    %100 = vector.extract_strided_slice %95 {offsets = [0, 96], sizes = [8, 32], strides = [1, 1]} : vector<8x128xf32> to vector<8x32xf32>
    %101 = arith.mulf %98, %82 : vector<8x32xf32>
    %102 = arith.mulf %97, %99 : vector<8x32xf32>
    %103 = arith.addf %101, %102 : vector<8x32xf32>
    %104 = math.tanh %103 : vector<8x32xf32>
    %105 = arith.mulf %100, %104 : vector<8x32xf32>
    %106 = vector.extract_strided_slice %17 {offsets = [32, 0], sizes = [8, 128], strides = [1, 1]} : vector<64x128xf32> to vector<8x128xf32>
    %107 = arith.truncf %105 : vector<8x32xf32> to vector<8x32xbf16>
    %cst_30 = arith.constant dense<0.000000e+00> : vector<8x128xf32>
    %108 = tpu.matmul %107, %19, %cst_30 {dimension_numbers = #tpu.dot_dimension_numbers<[1], [0], [0], [1], [0, 0, 1, 1], [], []>} : vector<8x32xbf16>, vector<32x128xbf16>, vector<8x128xf32> -> vector<8x128xf32>
    %109 = arith.addf %106, %108 : vector<8x128xf32>
    %cst_31 = arith.constant 5.000000e-01 : f32
    %110 = vector.broadcast %cst_31 : f32 to vector<8x128xf32>
    %111 = arith.mulf %110, %109 : vector<8x128xf32>
    %112 = math.tanh %111 : vector<8x128xf32>
    %cst_32 = arith.constant 1.000000e+00 : f32
    %113 = vector.broadcast %cst_32 : f32 to vector<8x128xf32>
    %114 = arith.addf %113, %112 : vector<8x128xf32>
    %cst_33 = arith.constant 5.000000e-01 : f32
    %115 = vector.broadcast %cst_33 : f32 to vector<8x128xf32>
    %116 = arith.mulf %115, %114 : vector<8x128xf32>
    %117 = math.tanh %109 : vector<8x128xf32>
    %118 = vector.extract_strided_slice %116 {offsets = [0, 0], sizes = [8, 32], strides = [1, 1]} : vector<8x128xf32> to vector<8x32xf32>
    %119 = vector.extract_strided_slice %116 {offsets = [0, 32], sizes = [8, 32], strides = [1, 1]} : vector<8x128xf32> to vector<8x32xf32>
    %120 = vector.extract_strided_slice %117 {offsets = [0, 64], sizes = [8, 32], strides = [1, 1]} : vector<8x128xf32> to vector<8x32xf32>
    %121 = vector.extract_strided_slice %116 {offsets = [0, 96], sizes = [8, 32], strides = [1, 1]} : vector<8x128xf32> to vector<8x32xf32>
    %122 = arith.mulf %119, %103 : vector<8x32xf32>
    %123 = arith.mulf %118, %120 : vector<8x32xf32>
    %124 = arith.addf %122, %123 : vector<8x32xf32>
    %125 = math.tanh %124 : vector<8x32xf32>
    %126 = arith.mulf %121, %125 : vector<8x32xf32>
    %127 = vector.extract_strided_slice %17 {offsets = [40, 0], sizes = [8, 128], strides = [1, 1]} : vector<64x128xf32> to vector<8x128xf32>
    %128 = arith.truncf %126 : vector<8x32xf32> to vector<8x32xbf16>
    %cst_34 = arith.constant dense<0.000000e+00> : vector<8x128xf32>
    %129 = tpu.matmul %128, %19, %cst_34 {dimension_numbers = #tpu.dot_dimension_numbers<[1], [0], [0], [1], [0, 0, 1, 1], [], []>} : vector<8x32xbf16>, vector<32x128xbf16>, vector<8x128xf32> -> vector<8x128xf32>
    %130 = arith.addf %127, %129 : vector<8x128xf32>
    %cst_35 = arith.constant 5.000000e-01 : f32
    %131 = vector.broadcast %cst_35 : f32 to vector<8x128xf32>
    %132 = arith.mulf %131, %130 : vector<8x128xf32>
    %133 = math.tanh %132 : vector<8x128xf32>
    %cst_36 = arith.constant 1.000000e+00 : f32
    %134 = vector.broadcast %cst_36 : f32 to vector<8x128xf32>
    %135 = arith.addf %134, %133 : vector<8x128xf32>
    %cst_37 = arith.constant 5.000000e-01 : f32
    %136 = vector.broadcast %cst_37 : f32 to vector<8x128xf32>
    %137 = arith.mulf %136, %135 : vector<8x128xf32>
    %138 = math.tanh %130 : vector<8x128xf32>
    %139 = vector.extract_strided_slice %137 {offsets = [0, 0], sizes = [8, 32], strides = [1, 1]} : vector<8x128xf32> to vector<8x32xf32>
    %140 = vector.extract_strided_slice %137 {offsets = [0, 32], sizes = [8, 32], strides = [1, 1]} : vector<8x128xf32> to vector<8x32xf32>
    %141 = vector.extract_strided_slice %138 {offsets = [0, 64], sizes = [8, 32], strides = [1, 1]} : vector<8x128xf32> to vector<8x32xf32>
    %142 = vector.extract_strided_slice %137 {offsets = [0, 96], sizes = [8, 32], strides = [1, 1]} : vector<8x128xf32> to vector<8x32xf32>
    %143 = arith.mulf %140, %124 : vector<8x32xf32>
    %144 = arith.mulf %139, %141 : vector<8x32xf32>
    %145 = arith.addf %143, %144 : vector<8x32xf32>
    %146 = math.tanh %145 : vector<8x32xf32>
    %147 = arith.mulf %142, %146 : vector<8x32xf32>
    %148 = vector.extract_strided_slice %17 {offsets = [48, 0], sizes = [8, 128], strides = [1, 1]} : vector<64x128xf32> to vector<8x128xf32>
    %149 = arith.truncf %147 : vector<8x32xf32> to vector<8x32xbf16>
    %cst_38 = arith.constant dense<0.000000e+00> : vector<8x128xf32>
    %150 = tpu.matmul %149, %19, %cst_38 {dimension_numbers = #tpu.dot_dimension_numbers<[1], [0], [0], [1], [0, 0, 1, 1], [], []>} : vector<8x32xbf16>, vector<32x128xbf16>, vector<8x128xf32> -> vector<8x128xf32>
    %151 = arith.addf %148, %150 : vector<8x128xf32>
    %cst_39 = arith.constant 5.000000e-01 : f32
    %152 = vector.broadcast %cst_39 : f32 to vector<8x128xf32>
    %153 = arith.mulf %152, %151 : vector<8x128xf32>
    %154 = math.tanh %153 : vector<8x128xf32>
    %cst_40 = arith.constant 1.000000e+00 : f32
    %155 = vector.broadcast %cst_40 : f32 to vector<8x128xf32>
    %156 = arith.addf %155, %154 : vector<8x128xf32>
    %cst_41 = arith.constant 5.000000e-01 : f32
    %157 = vector.broadcast %cst_41 : f32 to vector<8x128xf32>
    %158 = arith.mulf %157, %156 : vector<8x128xf32>
    %159 = math.tanh %151 : vector<8x128xf32>
    %160 = vector.extract_strided_slice %158 {offsets = [0, 0], sizes = [8, 32], strides = [1, 1]} : vector<8x128xf32> to vector<8x32xf32>
    %161 = vector.extract_strided_slice %158 {offsets = [0, 32], sizes = [8, 32], strides = [1, 1]} : vector<8x128xf32> to vector<8x32xf32>
    %162 = vector.extract_strided_slice %159 {offsets = [0, 64], sizes = [8, 32], strides = [1, 1]} : vector<8x128xf32> to vector<8x32xf32>
    %163 = vector.extract_strided_slice %158 {offsets = [0, 96], sizes = [8, 32], strides = [1, 1]} : vector<8x128xf32> to vector<8x32xf32>
    %164 = arith.mulf %161, %145 : vector<8x32xf32>
    %165 = arith.mulf %160, %162 : vector<8x32xf32>
    %166 = arith.addf %164, %165 : vector<8x32xf32>
    %167 = math.tanh %166 : vector<8x32xf32>
    %168 = arith.mulf %163, %167 : vector<8x32xf32>
    %169 = vector.extract_strided_slice %17 {offsets = [56, 0], sizes = [8, 128], strides = [1, 1]} : vector<64x128xf32> to vector<8x128xf32>
    %170 = arith.truncf %168 : vector<8x32xf32> to vector<8x32xbf16>
    %cst_42 = arith.constant dense<0.000000e+00> : vector<8x128xf32>
    %171 = tpu.matmul %170, %19, %cst_42 {dimension_numbers = #tpu.dot_dimension_numbers<[1], [0], [0], [1], [0, 0, 1, 1], [], []>} : vector<8x32xbf16>, vector<32x128xbf16>, vector<8x128xf32> -> vector<8x128xf32>
    %172 = arith.addf %169, %171 : vector<8x128xf32>
    %cst_43 = arith.constant 5.000000e-01 : f32
    %173 = vector.broadcast %cst_43 : f32 to vector<8x128xf32>
    %174 = arith.mulf %173, %172 : vector<8x128xf32>
    %175 = math.tanh %174 : vector<8x128xf32>
    %cst_44 = arith.constant 1.000000e+00 : f32
    %176 = vector.broadcast %cst_44 : f32 to vector<8x128xf32>
    %177 = arith.addf %176, %175 : vector<8x128xf32>
    %cst_45 = arith.constant 5.000000e-01 : f32
    %178 = vector.broadcast %cst_45 : f32 to vector<8x128xf32>
    %179 = arith.mulf %178, %177 : vector<8x128xf32>
    %180 = math.tanh %172 : vector<8x128xf32>
    %181 = vector.extract_strided_slice %179 {offsets = [0, 0], sizes = [8, 32], strides = [1, 1]} : vector<8x128xf32> to vector<8x32xf32>
    %182 = vector.extract_strided_slice %179 {offsets = [0, 32], sizes = [8, 32], strides = [1, 1]} : vector<8x128xf32> to vector<8x32xf32>
    %183 = vector.extract_strided_slice %180 {offsets = [0, 64], sizes = [8, 32], strides = [1, 1]} : vector<8x128xf32> to vector<8x32xf32>
    %184 = vector.extract_strided_slice %179 {offsets = [0, 96], sizes = [8, 32], strides = [1, 1]} : vector<8x128xf32> to vector<8x32xf32>
    %185 = arith.mulf %182, %166 : vector<8x32xf32>
    %186 = arith.mulf %181, %183 : vector<8x32xf32>
    %187 = arith.addf %185, %186 : vector<8x32xf32>
    %188 = math.tanh %187 : vector<8x32xf32>
    %189 = arith.mulf %184, %188 : vector<8x32xf32>
    %190 = tpu.concatenate %42, %63, %84, %105, %126, %147, %168, %189 in 0 : vector<8x32xf32>, vector<8x32xf32>, vector<8x32xf32>, vector<8x32xf32>, vector<8x32xf32>, vector<8x32xf32>, vector<8x32xf32>, vector<8x32xf32> -> vector<64x32xf32>
    %191 = arith.truncf %190 : vector<64x32xf32> to vector<64x32xbf16>
    %c0_46 = arith.constant 0 : index
    %c0_47 = arith.constant 0 : index
    %192 = vector.load %arg6[%c0_46, %c0_47] : memref<32x128xf32, #tpu.memory_space<vmem>>, vector<32x128xf32>
    %193 = arith.truncf %192 : vector<32x128xf32> to vector<32x128xbf16>
    %cst_48 = arith.constant dense<0.000000e+00> : vector<64x128xf32>
    %194 = tpu.matmul %191, %193, %cst_48 {dimension_numbers = #tpu.dot_dimension_numbers<[1], [0], [0], [1], [0, 0, 1, 1], [], []>} : vector<64x32xbf16>, vector<32x128xbf16>, vector<64x128xf32> -> vector<64x128xf32>
    %c0_49 = arith.constant 0 : index
    %c0_50 = arith.constant 0 : index
    %195 = vector.load %arg7[%c0_49, %c0_50] : memref<1x128xf32, #tpu.memory_space<vmem>>, vector<1x128xf32>
    %196 = vector.broadcast %195 : vector<1x128xf32> to vector<64x128xf32>
    %197 = arith.addf %194, %196 : vector<64x128xf32>
    %cst_51 = arith.constant dense<0xFF800000> : vector<64xf32>
    %198 = vector.multi_reduction <maximumf>, %197, %cst_51 [1] : vector<64x128xf32> to vector<64xf32>
    %199 = vector.shape_cast %198 : vector<64xf32> to vector<64x1xf32>
    %200 = vector.broadcast %199 : vector<64x1xf32> to vector<64x128xf32>
    %201 = arith.subf %197, %200 : vector<64x128xf32>
    %202 = math.exp %201 : vector<64x128xf32>
    %cst_52 = arith.constant dense<0.000000e+00> : vector<64xf32>
    %203 = vector.multi_reduction <add>, %202, %cst_52 [1] : vector<64x128xf32> to vector<64xf32>
    %204 = vector.shape_cast %203 : vector<64xf32> to vector<64x1xf32>
    %205 = math.log %204 : vector<64x1xf32>
    %206 = arith.addf %199, %205 : vector<64x1xf32>
    %207 = vector.broadcast %206 : vector<64x1xf32> to vector<64x128xf32>
    %208 = arith.subf %197, %207 : vector<64x128xf32>
    %c0_53 = arith.constant 0 : index
    %c0_54 = arith.constant 0 : index
    %209 = vector.load %arg8[%c0_53, %c0_54] : memref<64x128xf32, #tpu.memory_space<vmem>>, vector<64x128xf32>
    tpu.vector_store %arg8[%c0_53, %c0_54], %208 {strides = array<i32>} : memref<64x128xf32, #tpu.memory_space<vmem>>, vector<64x128xf32>,
    return
  }
  func.func @transform_0(%arg0: i32) -> (i32, i32) {
    %c0_i32 = arith.constant 0 : i32
    %c0_i32_0 = arith.constant 0 : i32
    return %arg0, %c0_i32 : i32, i32
  }
  func.func @transform_1(%arg0: i32) -> (i32, i32) {
    %c0_i32 = arith.constant 0 : i32
    %c0_i32_0 = arith.constant 0 : i32
    %c0_i32_1 = arith.constant 0 : i32
    return %c0_i32, %c0_i32_0 : i32, i32
  }
  func.func @transform_2(%arg0: i32) -> (i32, i32) {
    %c0_i32 = arith.constant 0 : i32
    %c0_i32_0 = arith.constant 0 : i32
    %c0_i32_1 = arith.constant 0 : i32
    return %c0_i32, %c0_i32_0 : i32, i32
  }
  func.func @transform_3(%arg0: i32) -> (i32, i32) {
    %c0_i32 = arith.constant 0 : i32
    %c0_i32_0 = arith.constant 0 : i32
    %c0_i32_1 = arith.constant 0 : i32
    return %c0_i32, %c0_i32_0 : i32, i32
  }
  func.func @transform_4(%arg0: i32) -> (i32, i32) {
    %c0_i32 = arith.constant 0 : i32
    %c0_i32_0 = arith.constant 0 : i32
    %c0_i32_1 = arith.constant 0 : i32
    return %c0_i32, %c0_i32_0 : i32, i32
  }
  func.func @transform_5(%arg0: i32) -> (i32, i32) {
    %c0_i32 = arith.constant 0 : i32
    %c0_i32_0 = arith.constant 0 : i32
    %c0_i32_1 = arith.constant 0 : i32
    return %c0_i32, %c0_i32_0 : i32, i32
  }
  func.func @transform_6(%arg0: i32) -> (i32, i32) {
    %c0_i32 = arith.constant 0 : i32
    %c0_i32_0 = arith.constant 0 : i32
    %c0_i32_1 = arith.constant 0 : i32
    return %c0_i32, %c0_i32_0 : i32, i32
  }
  func.func @transform_7(%arg0: i32) -> (i32, i32) {
    %c0_i32 = arith.constant 0 : i32
    %c0_i32_0 = arith.constant 0 : i32
    return %arg0, %c0_i32 : i32, i32
  }
}

</mosaic_0001>

<llo_original>
// kernel: tpu_custom_call.1
$region0: #{tpu_custom_call.1}
  #allocation0 [shape = 'u32[]', space=smem, size = 0x4, offset = 0x4, fixed_abs, tag = 'smem constant byte address 0x4 - core index']
  #allocation1 [shape = 'u32[144,128]{1,0:T(1,128)}', space=vmem, size = 0x12000, scoped, tag = 'internal scratch']
  %s0 = inlined_call_operand.vmem [shape: s32[128,1], index: 0, kind: input, shape index: {}]
  %s1 = inlined_call_operand.vmem [shape: f32[128,32], index: 1, kind: input, shape index: {}]
  %s2 = inlined_call_operand.vmem [shape: f32[32,128], index: 2, kind: input, shape index: {}]
  %s3 = inlined_call_operand.vmem [shape: f32[32,128], index: 3, kind: input, shape index: {}]
  %s4 = inlined_call_operand.vmem [shape: f32[1,128], index: 4, kind: input, shape index: {}]
  %s5 = inlined_call_operand.vmem [shape: f32[32,128], index: 5, kind: input, shape index: {}]
  %s6 = inlined_call_operand.vmem [shape: f32[1,128], index: 6, kind: input, shape index: {}]
  %s7 = inlined_call_operand.hbm [shape: f32[128,128], index: 7, kind: output, shape index: {}]
  %s8 = sld [smem:[#allocation0]]
  $region61: #{tpu_custom_call.1} parent=0
    _
  %s10 = ssub.s32 1, %s8
  %s11 = scalar_select 0, %s10, %s8
  $region1: #{tpu_custom_call.1} parent=0
    #allocation2 [shape = 'u8[65536]{0}', space=vmem, size = 0x10000, scoped, tag = 'output window, operand 0']
    #allocation3 [shape = 's32[2]{0}', space=sflag, size = 0x8, scoped, tag = 'scoped memory for tpu_custom_call.1']
    %12 = vsyncpa [#allocation3], 0
    %s13 = scalar_lea.sflag [#allocation3], 1
    %14 = vsyncpa %s13, 0
    loop: start=0, step=1, limit=4
    $region2: #{tpu_custom_call.1} parent=1 // loop_pre_header
      _
    $region3: #{tpu_custom_call.1} parent=1 // loop_header
      %s16 = sphi 0, %s20
      %p17 = scmp.ge.s32.totalorder %s16, 4
      %s26 = sphi 0, %s28
      %s29 = sphi 0, %s26
      %s30 = sphi 0, %s29
      %s46 = sphi 0, %s30
      %s50 = sphi 0, %s50
      %s52 = sphi 0, %s50
      %s53 = sphi 0, %s52
      %s67 = sphi 0, %s53
      %s71 = sphi 0, %s71
      %s73 = sphi 0, %s71
      %s74 = sphi 0, %s73
      %s88 = sphi 0, %s74
      %s92 = sphi 0, %s92
      %s94 = sphi 0, %s92
      %s95 = sphi 0, %s94
      %s109 = sphi 0, %s95
      %s113 = sphi 0, %s113
      %s115 = sphi 0, %s113
      %s116 = sphi 0, %s115
      %s130 = sphi 0, %s116
      %s134 = sphi 0, %s134
      %s136 = sphi 0, %s134
      %s137 = sphi 0, %s136
      %s151 = sphi 0, %s137
      %s155 = sphi 0, %s155
      %s157 = sphi 0, %s155
      %s158 = sphi 0, %s157
      %s172 = sphi 0, %s158
      %s178 = sphi 0, %s180
      %s181 = sphi 0, %s178
      %s182 = sphi 0, %s181
      %s198 = sphi 0, %s182
    $region4: #{tpu_custom_call.1} parent=1 // loop_header_branch
      %19 = sbr.rel (%p17) target = $region8
    $region5: #{tpu_custom_call.1} parent=1 // loop_body
      %s21 = ssub.s32 %s16, 1
      %s22 = ssub.s32 %s16, 2
      %s23 = sadd.s32 %s16, 1
      %s24 = ssub.s32 %s16, %s23
      %p25 = scmp.eq.s32.totalorder %s24, 0
      %s27 = sadd.s32 %s26, 1
      %s28 = scalar_select %p25, %s26, %s27
      %p31 = pneg %p25
      %p32 = scmp.eq.s32.totalorder %s16, 1
      %p33 = por %p31, %p32
      %p34 = scmp.ne.s32.totalorder %s26, %s29
      %p35 = scmp.eq.s32.totalorder %s16, 0
      %p36 = por %p34, %p35
      %p37 = scmp.ne.s32.totalorder %s26, %s29
      %p38 = scmp.eq.s32.totalorder %s21, 1
      %p39 = por %p37, %p38
      %p40 = scmp.ne.s32.totalorder %s29, %s30
      %p41 = scmp.eq.s32.totalorder %s21, 0
      %p42 = por %p40, %p41
      %p43 = scmp.ne.s32.totalorder %s29, %s30
      %p44 = scmp.eq.s32.totalorder %s22, 1
      %p45 = por %p43, %p44
      %p47 = scmp.ne.s32.totalorder %s30, %s46
      %p48 = scmp.eq.s32.totalorder %s22, 0
      %p49 = por %p47, %p48
      %s51 = sadd.s32 %s50, 1
      %p54 = scmp.eq.s32.totalorder %s16, 1
      %p55 = scmp.ne.s32.totalorder %s50, %s52
      %p56 = scmp.eq.s32.totalorder %s16, 0
      %p57 = por %p55, %p56
      %p58 = scmp.ne.s32.totalorder %s50, %s52
      %p59 = scmp.eq.s32.totalorder %s21, 1
      %p60 = por %p58, %p59
      %p61 = scmp.ne.s32.totalorder %s52, %s53
      %p62 = scmp.eq.s32.totalorder %s21, 0
      %p63 = por %p61, %p62
      %p64 = scmp.ne.s32.totalorder %s52, %s53
      %p65 = scmp.eq.s32.totalorder %s22, 1
      %p66 = por %p64, %p65
      %p68 = scmp.ne.s32.totalorder %s53, %s67
      %p69 = scmp.eq.s32.totalorder %s22, 0
      %p70 = por %p68, %p69
      %s72 = sadd.s32 %s71, 1
      %p75 = scmp.eq.s32.totalorder %s16, 1
      %p76 = scmp.ne.s32.totalorder %s71, %s73
      %p77 = scmp.eq.s32.totalorder %s16, 0
      %p78 = por %p76, %p77
      %p79 = scmp.ne.s32.totalorder %s71, %s73
      %p80 = scmp.eq.s32.totalorder %s21, 1
      %p81 = por %p79, %p80
      %p82 = scmp.ne.s32.totalorder %s73, %s74
      %p83 = scmp.eq.s32.totalorder %s21, 0
      %p84 = por %p82, %p83
      %p85 = scmp.ne.s32.totalorder %s73, %s74
      %p86 = scmp.eq.s32.totalorder %s22, 1
      %p87 = por %p85, %p86
      %p89 = scmp.ne.s32.totalorder %s74, %s88
      %p90 = scmp.eq.s32.totalorder %s22, 0
      %p91 = por %p89, %p90
      %s93 = sadd.s32 %s92, 1
      %p96 = scmp.eq.s32.totalorder %s16, 1
      %p97 = scmp.ne.s32.totalorder %s92, %s94
      %p98 = scmp.eq.s32.totalorder %s16, 0
      %p99 = por %p97, %p98
      %p100 = scmp.ne.s32.totalorder %s92, %s94
      %p101 = scmp.eq.s32.totalorder %s21, 1
      %p102 = por %p100, %p101
      %p103 = scmp.ne.s32.totalorder %s94, %s95
      %p104 = scmp.eq.s32.totalorder %s21, 0
      %p105 = por %p103, %p104
      %p106 = scmp.ne.s32.totalorder %s94, %s95
      %p107 = scmp.eq.s32.totalorder %s22, 1
      %p108 = por %p106, %p107
      %p110 = scmp.ne.s32.totalorder %s95, %s109
      %p111 = scmp.eq.s32.totalorder %s22, 0
      %p112 = por %p110, %p111
      %s114 = sadd.s32 %s113, 1
      %p117 = scmp.eq.s32.totalorder %s16, 1
      %p118 = scmp.ne.s32.totalorder %s113, %s115
      %p119 = scmp.eq.s32.totalorder %s16, 0
      %p120 = por %p118, %p119
      %p121 = scmp.ne.s32.totalorder %s113, %s115
      %p122 = scmp.eq.s32.totalorder %s21, 1
      %p123 = por %p121, %p122
      %p124 = scmp.ne.s32.totalorder %s115, %s116
      %p125 = scmp.eq.s32.totalorder %s21, 0
      %p126 = por %p124, %p125
      %p127 = scmp.ne.s32.totalorder %s115, %s116
      %p128 = scmp.eq.s32.totalorder %s22, 1
      %p129 = por %p127, %p128
      %p131 = scmp.ne.s32.totalorder %s116, %s130
      %p132 = scmp.eq.s32.totalorder %s22, 0
      %p133 = por %p131, %p132
      %s135 = sadd.s32 %s134, 1
      %p138 = scmp.eq.s32.totalorder %s16, 1
      %p139 = scmp.ne.s32.totalorder %s134, %s136
      %p140 = scmp.eq.s32.totalorder %s16, 0
      %p141 = por %p139, %p140
      %p142 = scmp.ne.s32.totalorder %s134, %s136
      %p143 = scmp.eq.s32.totalorder %s21, 1
      %p144 = por %p142, %p143
      %p145 = scmp.ne.s32.totalorder %s136, %s137
      %p146 = scmp.eq.s32.totalorder %s21, 0
      %p147 = por %p145, %p146
      %p148 = scmp.ne.s32.totalorder %s136, %s137
      %p149 = scmp.eq.s32.totalorder %s22, 1
      %p150 = por %p148, %p149
      %p152 = scmp.ne.s32.totalorder %s137, %s151
      %p153 = scmp.eq.s32.totalorder %s22, 0
      %p154 = por %p152, %p153
      %s156 = sadd.s32 %s155, 1
      %p159 = scmp.eq.s32.totalorder %s16, 1
      %p160 = scmp.ne.s32.totalorder %s155, %s157
      %p161 = scmp.eq.s32.totalorder %s16, 0
      %p162 = por %p160, %p161
      %p163 = scmp.ne.s32.totalorder %s155, %s157
      %p164 = scmp.eq.s32.totalorder %s21, 1
      %p165 = por %p163, %p164
      %p166 = scmp.ne.s32.totalorder %s157, %s158
      %p167 = scmp.eq.s32.totalorder %s21, 0
      %p168 = por %p166, %p167
      %p169 = scmp.ne.s32.totalorder %s157, %s158
      %p170 = scmp.eq.s32.totalorder %s22, 1
      %p171 = por %p169, %p170
      %p173 = scmp.ne.s32.totalorder %s158, %s172
      %p174 = scmp.eq.s32.totalorder %s22, 0
      %p175 = por %p173, %p174
      %s176 = ssub.s32 %s16, %s23
      %p177 = scmp.eq.s32.totalorder %s176, 0
      %s179 = sadd.s32 %s178, 1
      %s180 = scalar_select %p177, %s178, %s179
      %p183 = pneg %p177
      %p184 = scmp.eq.s32.totalorder %s16, 1
      %p185 = por %p183, %p184
      %p186 = scmp.ne.s32.totalorder %s178, %s181
      %p187 = scmp.eq.s32.totalorder %s16, 0
      %p188 = por %p186, %p187
      %p189 = scmp.ne.s32.totalorder %s178, %s181
      %p190 = scmp.eq.s32.totalorder %s21, 1
      %p191 = por %p189, %p190
      %p192 = scmp.ne.s32.totalorder %s181, %s182
      %p193 = scmp.eq.s32.totalorder %s21, 0
      %p194 = por %p192, %p193
      %p195 = scmp.ne.s32.totalorder %s181, %s182
      %p196 = scmp.eq.s32.totalorder %s22, 1
      %p197 = por %p195, %p196
      %p199 = scmp.ne.s32.totalorder %s182, %s198
      %p200 = scmp.eq.s32.totalorder %s22, 0
      %p201 = por %p199, %p200
      %p202 = scmp.le.s32.totalorder 1, %s16
      %p203 = scmp.lt.s32.totalorder %s16, 3
      %p204 = pnand %p202, %p203
      %p205 = pneg %p204
      // Predicated region
      $region9: #{tpu_custom_call.1} parent=5 // pred_check
        _
      $region10: #{tpu_custom_call.1} parent=5 // pred_check_branch
        %207 = sbr.rel (%p204) target = $region12
      $region11: #{tpu_custom_call.1} parent=5 // pred_region
        %s208 = ssub.s32 %s16, 1
        // Predicated region
        $region13: #{tpu_custom_call.1} parent=11 // pred_check
          %p209 = pneg %p63
        $region14: #{tpu_custom_call.1} parent=11 // pred_check_branch
          %211 = sbr.rel (%p209) target = $region16
        $region15: #{tpu_custom_call.1} parent=11 // pred_region
          _
        $region16: #{tpu_custom_call.1} parent=11 // pred_fallthru
          _
        // Predicated region
        $region17: #{tpu_custom_call.1} parent=11 // pred_check
          %p212 = pneg %p84
        $region18: #{tpu_custom_call.1} parent=11 // pred_check_branch
          %214 = sbr.rel (%p212) target = $region20
        $region19: #{tpu_custom_call.1} parent=11 // pred_region
          _
        $region20: #{tpu_custom_call.1} parent=11 // pred_fallthru
          _
        // Predicated region
        $region21: #{tpu_custom_call.1} parent=11 // pred_check
          %p215 = pneg %p105
        $region22: #{tpu_custom_call.1} parent=11 // pred_check_branch
          %217 = sbr.rel (%p215) target = $region24
        $region23: #{tpu_custom_call.1} parent=11 // pred_region
          _
        $region24: #{tpu_custom_call.1} parent=11 // pred_fallthru
          _
        // Predicated region
        $region25: #{tpu_custom_call.1} parent=11 // pred_check
          %p218 = pneg %p126
        $region26: #{tpu_custom_call.1} parent=11 // pred_check_branch
          %220 = sbr.rel (%p218) target = $region28
        $region27: #{tpu_custom_call.1} parent=11 // pred_region
          _
        $region28: #{tpu_custom_call.1} parent=11 // pred_fallthru
          _
        // Predicated region
        $region29: #{tpu_custom_call.1} parent=11 // pred_check
          %p221 = pneg %p147
        $region30: #{tpu_custom_call.1} parent=11 // pred_check_branch
          %223 = sbr.rel (%p221) target = $region32
        $region31: #{tpu_custom_call.1} parent=11 // pred_region
          _
        $region32: #{tpu_custom_call.1} parent=11 // pred_fallthru
          _
        // Predicated region
        $region33: #{tpu_custom_call.1} parent=11 // pred_check
          %p224 = pneg %p168
        $region34: #{tpu_custom_call.1} parent=11 // pred_check_branch
          %226 = sbr.rel (%p224) target = $region36
        $region35: #{tpu_custom_call.1} parent=11 // pred_region
          _
        $region36: #{tpu_custom_call.1} parent=11 // pred_fallthru
          _
      $region12: #{tpu_custom_call.1} parent=5 // pred_fallthru
        _
      %p227 = scmp.lt.s32.totalorder %s16, 2
      // Predicated region
      $region37: #{tpu_custom_call.1} parent=5 // pred_check
        %p228 = pneg %p227
      $region38: #{tpu_custom_call.1} parent=5 // pred_check_branch
        %230 = sbr.rel (%p228) target = $region40
      $region39: #{tpu_custom_call.1} parent=5 // pred_region
        // Predicated region
        $region41: #{tpu_custom_call.1} parent=39 // pred_check
          %p231 = pneg %p36
        $region42: #{tpu_custom_call.1} parent=39 // pred_check_branch
          %233 = sbr.rel (%p231) target = $region44
        $region43: #{tpu_custom_call.1} parent=39 // pred_region
          %s234 = smul.u32 8, %s16
          %p235 = scmp.lt.s32.totalorder %s234, 15
          %s236 = scalar_select %p235, %s234, 15
          %s237 = smul.addr %s236, 8
          %s238 = scalar_lea.vmem %s0, %s237
          %s239 = smul.u32 8, %s16
        $region44: #{tpu_custom_call.1} parent=39 // pred_fallthru
          _
      $region40: #{tpu_custom_call.1} parent=5 // pred_fallthru
        _
      %p240 = scmp.le.s32.totalorder 1, %s16
      %p241 = scmp.lt.s32.totalorder %s16, 3
      %p242 = pnand %p240, %p241
      %p243 = pneg %p242
      // Predicated region
      $region45: #{tpu_custom_call.1} parent=5 // pred_check
        _
      $region46: #{tpu_custom_call.1} parent=5 // pred_check_branch
        %245 = sbr.rel (%p242) target = $region48
      $region47: #{tpu_custom_call.1} parent=5 // pred_region
        %s246 = ssub.s32 %s16, 1
        %s247 = smul.u32 8, %s21
        %p248 = scmp.lt.s32.totalorder %s247, 15
        %s249 = scalar_select %p248, %s247, 15
        %s250 = smul.addr %s249, 8
        %s251 = scalar_lea.vmem %s0, %s250
        %p252 = pneg %p42
        %p253 = pneg %p39
        %p254 = pneg %p63
        %p255 = pneg %p60
        %p256 = pneg %p84
        %p257 = pneg %p81
        %p258 = pneg %p105
        %p259 = pneg %p102
        %p260 = pneg %p126
        %p261 = pneg %p123
        %p262 = pneg %p147
        %p263 = pneg %p144
        %p264 = pneg %p168
        %p265 = pneg %p165
        %p266 = pneg %p194
        %p267 = pneg %p191
        %s268 = sand.u32 %s181, 1
        %s269 = scalar_lea.sflag [#allocation3], %s268
        %s270 = sand.u32 %s181, 1
        %s271 = smul.addr %s270, 64
        %s272 = scalar_lea.vmem [#allocation2], %s271
        %s273 = smul.u32 8, %s21
        %p274 = scmp.lt.s32.totalorder %s273, 15
        %s275 = scalar_select %p274, %s273, 15
        %s276 = smul.addr %s275, 8
        %s277 = scalar_lea.vmem %s0, %s276
        %s278 = smul.u32 8, %s21
        %s279 = smul.u32 8, %s21
        %v281 = vld [vmem:[%s277] sm:$0xff]
        %v282 = vld [vmem:[%s277 + $0x8] sm:$0xff]
        %v283 = vld [vmem:[%s277 + $0x10] sm:$0xff]
        %v284 = vld [vmem:[%s277 + $0x18] sm:$0xff]
        %v285 = vld [vmem:[%s277 + $0x20] sm:$0xff]
        %v286 = vld [vmem:[%s277 + $0x28] sm:$0xff]
        %v287 = vld [vmem:[%s277 + $0x30] sm:$0xff]
        %v288 = vld [vmem:[%s277 + $0x38] sm:$0xff]
        %v289 = vlaneseq
        %v290 = vand.u32 %v289, 127
        %291 = vset.pattern.permute.xlu0 0
        %292 = vperm.xlu0 %291, %v281
        %v293 = vpop.permute.xlu0 %292
        %294 = vset.pattern.permute.xlu0 0
        %295 = vperm.xlu0 %294, %v282
        %v296 = vpop.permute.xlu0 %295
        %297 = vset.pattern.permute.xlu0 0
        %298 = vperm.xlu0 %297, %v283
        %v299 = vpop.permute.xlu0 %298
        %300 = vset.pattern.permute.xlu0 0
        %301 = vperm.xlu0 %300, %v284
        %v302 = vpop.permute.xlu0 %301
        %303 = vset.pattern.permute.xlu0 0
        %304 = vperm.xlu0 %303, %v285
        %v305 = vpop.permute.xlu0 %304
        %306 = vset.pattern.permute.xlu0 0
        %307 = vperm.xlu0 %306, %v286
        %v308 = vpop.permute.xlu0 %307
        %309 = vset.pattern.permute.xlu0 0
        %310 = vperm.xlu0 %309, %v287
        %v311 = vpop.permute.xlu0 %310
        %312 = vset.pattern.permute.xlu0 0
        %313 = vperm.xlu0 %312, %v288
        %v314 = vpop.permute.xlu0 %313
        %vm315 = vcmp.eq.s32.totalorder %v290, %v293
        %vm316 = vcmp.eq.s32.totalorder %v290, %v296
        %vm317 = vcmp.eq.s32.totalorder %v290, %v299
        %vm318 = vcmp.eq.s32.totalorder %v290, %v302
        %vm319 = vcmp.eq.s32.totalorder %v290, %v305
        %vm320 = vcmp.eq.s32.totalorder %v290, %v308
        %vm321 = vcmp.eq.s32.totalorder %v290, %v311
        %vm322 = vcmp.eq.s32.totalorder %v290, %v314
        %v323 = vsel %vm315, 1.0, 0.0
        %v324 = vsel %vm316, 1.0, 0.0
        %v325 = vsel %vm317, 1.0, 0.0
        %v326 = vsel %vm318, 1.0, 0.0
        %v327 = vsel %vm319, 1.0, 0.0
        %v328 = vsel %vm320, 1.0, 0.0
        %v329 = vsel %vm321, 1.0, 0.0
        %v330 = vsel %vm322, 1.0, 0.0
        %v331 = vpack.c.bf16 %v324, %v323
        %v332 = vpack.c.bf16 %v326, %v325
        %v333 = vpack.c.bf16 %v328, %v327
        %v334 = vpack.c.bf16 %v330, %v329
        %v335 = vld [vmem:[%s1] sm:$0xff]
        %v336 = vld [vmem:[%s1 + $0x8] sm:$0xff]
        %v337 = vld [vmem:[%s1 + $0x10] sm:$0xff]
        %v338 = vld [vmem:[%s1 + $0x18] sm:$0xff]
        %v339 = vld [vmem:[%s1 + $0x20] sm:$0xff]
        %v340 = vld [vmem:[%s1 + $0x28] sm:$0xff]
        %v341 = vld [vmem:[%s1 + $0x30] sm:$0xff]
        %v342 = vld [vmem:[%s1 + $0x38] sm:$0xff]
        %v343 = vld [vmem:[%s1 + $0x40] sm:$0xff]
        %v344 = vld [vmem:[%s1 + $0x48] sm:$0xff]
        %v345 = vld [vmem:[%s1 + $0x50] sm:$0xff]
        %v346 = vld [vmem:[%s1 + $0x58] sm:$0xff]
        %v347 = vld [vmem:[%s1 + $0x60] sm:$0xff]
        %v348 = vld [vmem:[%s1 + $0x68] sm:$0xff]
        %v349 = vld [vmem:[%s1 + $0x70] sm:$0xff]
        %v350 = vld [vmem:[%s1 + $0x78] sm:$0xff]
        %v351 = vpack.c.bf16 %v336, %v335
        %v352 = vpack.c.bf16 %v338, %v337
        %v353 = vpack.c.bf16 %v340, %v339
        %v354 = vpack.c.bf16 %v342, %v341
        %v355 = vpack.c.bf16 %v344, %v343
        %v356 = vpack.c.bf16 %v346, %v345
        %v357 = vpack.c.bf16 %v348, %v347
        %v358 = vpack.c.bf16 %v350, %v349
        %359 = vmatprep.subr.bf16.mxu0 0
        %360 = vmatpush1.bf16.msra.mxu0 %v358
        %361 = vmatprep.subr.bf16.mxu0 0
        %362 = vmatpush1.bf16.msra.mxu0 %v357
        %363 = vmatprep.subr.bf16.mxu0 0
        %364 = vmatpush1.bf16.msra.mxu0 %v356
        %365 = vmatprep.subr.bf16.mxu0 0
        %366 = vmatpush1.bf16.msra.mxu0 %v355
        %367 = vmatprep.subr.bf16.mxu0 0
        %368 = vmatpush1.bf16.msra.mxu0 %v354
        %369 = vmatprep.subr.bf16.mxu0 0
        %370 = vmatpush1.bf16.msra.mxu0 %v353
        %371 = vmatprep.subr.bf16.mxu0 0
        %372 = vmatpush1.bf16.msra.mxu0 %v352
        %373 = vmatprep.subr.bf16.mxu0 0
        %374 = vmatpush1.bf16.msra.mxu0 %v351
        %375 = vmatprep.subr.bf16.mxu0 0
        %376 = vmatpush2.bf16.msra.mxu0 0
        %377 = vmatprep.subr.bf16.mxu0 0
        %378 = vmatpush2.bf16.msra.mxu0 0
        %379 = vmatprep.subr.bf16.mxu0 0
        %380 = vmatpush2.bf16.msra.mxu0 0
        %381 = vmatprep.subr.bf16.mxu0 0
        %382 = vmatpush2.bf16.msra.mxu0 0
        %383 = vmatprep.subr.bf16.mxu0 0
        %384 = vmatpush2.bf16.msra.mxu0 0
        %385 = vmatprep.subr.bf16.mxu0 0
        %386 = vmatpush2.bf16.msra.mxu0 0
        %387 = vmatprep.subr.bf16.mxu0 0
        %388 = vmatpush2.bf16.msra.mxu0 0
        %389 = vmatprep.subr.bf16.mxu0 0
        %390 = vmatpush2.bf16.msra.mxu0 0
        %391 = vmatprep.mubr.bf16.mxu0 0
        %392 = vmatmul.mubr.bf16.gmra.mxu0 %v331
        %v393 = vpop.f32.mrf.mxu0
        %v394 = vadd.f32 0.0, %v393
        %v395 = vpop.f32.mrf.mxu0
        %v396 = vpop.f32.mrf.mxu0
        %v397 = vadd.f32 0.0, %v396
        %v398 = vpop.f32.mrf.mxu0
        %399 = vmatprep.mubr.bf16.mxu0 0
        %400 = vmatmul.mubr.bf16.gmra.mxu0 %v332
        %v401 = vpop.f32.mrf.mxu0
        %v402 = vadd.f32 0.0, %v401
        %v403 = vpop.f32.mrf.mxu0
        %v404 = vpop.f32.mrf.mxu0
        %v405 = vadd.f32 0.0, %v404
        %v406 = vpop.f32.mrf.mxu0
        %407 = vmatprep.mubr.bf16.mxu0 0
        %408 = vmatmul.mubr.bf16.gmra.mxu0 %v333
        %v409 = vpop.f32.mrf.mxu0
        %v410 = vadd.f32 0.0, %v409
        %v411 = vpop.f32.mrf.mxu0
        %v412 = vpop.f32.mrf.mxu0
        %v413 = vadd.f32 0.0, %v412
        %v414 = vpop.f32.mrf.mxu0
        %415 = vmatprep.mubr.bf16.mxu0 0
        %416 = vmatmul.mubr.bf16.gmra.mxu0 %v334
        %v417 = vpop.f32.mrf.mxu0
        %v418 = vadd.f32 0.0, %v417
        %v419 = vpop.f32.mrf.mxu0
        %v420 = vpop.f32.mrf.mxu0
        %v421 = vadd.f32 0.0, %v420
        %v422 = vpop.f32.mrf.mxu0
        %423 = vdwg.mxu0
        %v424 = vpack.c.bf16 %v397, %v394
        %v425 = vpack.c.bf16 %v405, %v402
        %v426 = vpack.c.bf16 %v413, %v410
        %v427 = vpack.c.bf16 %v421, %v418
        %v428 = vld [vmem:[%s2] sm:$0xff]
        %v429 = vld [vmem:[%s2 + $0x8] sm:$0xff]
        %v430 = vld [vmem:[%s2 + $0x10] sm:$0xff]
        %v431 = vld [vmem:[%s2 + $0x18] sm:$0xff]
        %v432 = vpack.c.bf16 %v429, %v428
        %v433 = vpack.c.bf16 %v431, %v430
        %v434 = vld [vmem:[%s4] sm:$0x1]
        %v436 = vlaneseq
        %v437 = vshrl.u32 %v436, 7
        %v438 = vsub.s32 0, %v437
        %v439 = vrot.slane %v434, %v438
        %vm441 = vcmask 261120
        %v443 = vsel %vm441, %v424, 0
        %v446 = vsel %vm441, %v425, 0
        %v449 = vsel %vm441, %v426, 0
        %v452 = vsel %vm441, %v427, 0
        %454 = vmatprep.subr.bf16.mxu0 0
        %455 = vmatpush1.bf16.msra.mxu0 0
        %456 = vmatprep.subr.bf16.mxu0 0
        %457 = vmatpush1.bf16.msra.mxu0 0
        %458 = vmatprep.subr.bf16.mxu0 0
        %459 = vmatpush1.bf16.msra.mxu0 0
        %460 = vmatprep.subr.bf16.mxu0 0
        %461 = vmatpush1.bf16.msra.mxu0 0
        %462 = vmatprep.subr.bf16.mxu0 0
        %463 = vmatpush1.bf16.msra.mxu0 0
        %464 = vmatprep.subr.bf16.mxu0 0
        %465 = vmatpush1.bf16.msra.mxu0 0
        %466 = vmatprep.subr.bf16.mxu0 0
        %467 = vmatpush1.bf16.msra.mxu0 %v433
        %468 = vmatprep.subr.bf16.mxu0 0
        %469 = vmatpush1.bf16.msra.mxu0 %v432
        %470 = vmatprep.subr.bf16.mxu0 0
        %471 = vmatpush2.bf16.msra.mxu0 0
        %472 = vmatprep.subr.bf16.mxu0 0
        %473 = vmatpush2.bf16.msra.mxu0 0
        %474 = vmatprep.subr.bf16.mxu0 0
        %475 = vmatpush2.bf16.msra.mxu0 0
        %476 = vmatprep.subr.bf16.mxu0 0
        %477 = vmatpush2.bf16.msra.mxu0 0
        %478 = vmatprep.subr.bf16.mxu0 0
        %479 = vmatpush2.bf16.msra.mxu0 0
        %480 = vmatprep.subr.bf16.mxu0 0
        %481 = vmatpush2.bf16.msra.mxu0 0
        %482 = vmatprep.subr.bf16.mxu0 0
        %483 = vmatpush2.bf16.msra.mxu0 0
        %484 = vmatprep.subr.bf16.mxu0 0
        %485 = vmatpush2.bf16.msra.mxu0 0
        %486 = vmatprep.mubr.bf16.mxu0 0
        %487 = vmatmul.mubr.bf16.gmra.mxu0 %v443
        %v488 = vpop.f32.mrf.mxu0
        %v489 = vadd.f32 %v439, %v488
        %v490 = vpop.f32.mrf.mxu0
        %v491 = vpop.f32.mrf.mxu0
        %v492 = vadd.f32 %v439, %v491
        %v493 = vpop.f32.mrf.mxu0
        %494 = vmatprep.mubr.bf16.mxu0 0
        %495 = vmatmul.mubr.bf16.gmra.mxu0 %v446
        %v496 = vpop.f32.mrf.mxu0
        %v497 = vadd.f32 %v439, %v496
        %v498 = vpop.f32.mrf.mxu0
        %v499 = vpop.f32.mrf.mxu0
        %v500 = vadd.f32 %v439, %v499
        %v501 = vpop.f32.mrf.mxu0
        %502 = vmatprep.mubr.bf16.mxu0 0
        %503 = vmatmul.mubr.bf16.gmra.mxu0 %v449
        %v504 = vpop.f32.mrf.mxu0
        %v505 = vadd.f32 %v439, %v504
        %v506 = vpop.f32.mrf.mxu0
        %v507 = vpop.f32.mrf.mxu0
        %v508 = vadd.f32 %v439, %v507
        %v509 = vpop.f32.mrf.mxu0
        %510 = vmatprep.mubr.bf16.mxu0 0
        %511 = vmatmul.mubr.bf16.gmra.mxu0 %v452
        %v512 = vpop.f32.mrf.mxu0
        %v513 = vadd.f32 %v439, %v512
        %v514 = vpop.f32.mrf.mxu0
        %v515 = vpop.f32.mrf.mxu0
        %v516 = vadd.f32 %v439, %v515
        %v517 = vpop.f32.mrf.mxu0
        %518 = vdwg.mxu0
        %v519 = vld [vmem:[%s3] sm:$0xff]
        %v520 = vld [vmem:[%s3 + $0x8] sm:$0xff]
        %v521 = vld [vmem:[%s3 + $0x10] sm:$0xff]
        %v522 = vld [vmem:[%s3 + $0x18] sm:$0xff]
        %v523 = vpack.c.bf16 %v520, %v519
        %v524 = vpack.c.bf16 %v522, %v521
        %v526 = vsel %vm441, 0, 0
        %528 = vmatprep.subr.bf16.mxu0 0
        %529 = vmatpush1.bf16.msra.mxu0 0
        %530 = vmatprep.subr.bf16.mxu0 0
        %531 = vmatpush1.bf16.msra.mxu0 0
        %532 = vmatprep.subr.bf16.mxu0 0
        %533 = vmatpush1.bf16.msra.mxu0 0
        %534 = vmatprep.subr.bf16.mxu0 0
        %535 = vmatpush1.bf16.msra.mxu0 0
        %536 = vmatprep.subr.bf16.mxu0 0
        %537 = vmatpush1.bf16.msra.mxu0 0
        %538 = vmatprep.subr.bf16.mxu0 0
        %539 = vmatpush1.bf16.msra.mxu0 0
        %540 = vmatprep.subr.bf16.mxu0 0
        %541 = vmatpush1.bf16.msra.mxu0 %v524
        %542 = vmatprep.subr.bf16.mxu0 0
        %543 = vmatpush1.bf16.msra.mxu0 %v523
        %544 = vmatprep.subr.bf16.mxu0 0
        %545 = vmatpush2.bf16.msra.mxu0 0
        %546 = vmatprep.subr.bf16.mxu0 0
        %547 = vmatpush2.bf16.msra.mxu0 0
        %548 = vmatprep.subr.bf16.mxu0 0
        %549 = vmatpush2.bf16.msra.mxu0 0
        %550 = vmatprep.subr.bf16.mxu0 0
        %551 = vmatpush2.bf16.msra.mxu0 0
        %552 = vmatprep.subr.bf16.mxu0 0
        %553 = vmatpush2.bf16.msra.mxu0 0
        %554 = vmatprep.subr.bf16.mxu0 0
        %555 = vmatpush2.bf16.msra.mxu0 0
        %556 = vmatprep.subr.bf16.mxu0 0
        %557 = vmatpush2.bf16.msra.mxu0 0
        %558 = vmatprep.subr.bf16.mxu0 0
        %559 = vmatpush2.bf16.msra.mxu0 0
        %560 = vmatprep.mubr.bf16.mxu0 0
        %561 = vmatmul.mubr.bf16.gmra.mxu0 %v526
        %v562 = vpop.f32.mrf.mxu0
        %v563 = vadd.f32 0.0, %v562
        %v564 = vpop.f32.mrf.mxu0
        %v565 = vpop.f32.mrf.mxu0
        %v566 = vpop.f32.mrf.mxu0
        %567 = vdwg.mxu0
        %v568 = vadd.f32 %v489, %v563
        %v569 = vmul.f32 %v568, 0.5
        %v570 = vtanh.pop %v569
        %v571 = vadd.f32 %v570, 1.0
        %v572 = vmul.f32 %v571, 0.5
        %v573 = vtanh.pop %v568
        %v574 = vmul.f32 %v572, 0.0
        %576 = vrot.lane.b32.xlu0 %v573, 64
        %v577 = vpop.permute.xlu0 %576
        %v579 = vmul.f32 %v572, %v577
        %581 = vrot.lane.b32.xlu0 %v579, 32
        %v582 = vpop.permute.xlu0 %581
        %v584 = vadd.f32 %v574, %v582
        %v585 = vtanh.pop %v584
        %587 = vrot.lane.b32.xlu0 %v585, 64
        %v588 = vpop.permute.xlu0 %587
        %v590 = vmul.f32 %v572, %v588
        %v591 = vpack.c.bf16 %v590, %v590
        %593 = vrot.lane.b32.xlu0 %v591, 32
        %v594 = vpop.permute.xlu0 %593
        %v596 = vsel %vm441, %v594, 0
        %598 = vmatprep.subr.bf16.mxu0 0
        %599 = vmatpush1.bf16.msra.mxu0 0
        %600 = vmatprep.subr.bf16.mxu0 0
        %601 = vmatpush1.bf16.msra.mxu0 0
        %602 = vmatprep.subr.bf16.mxu0 0
        %603 = vmatpush1.bf16.msra.mxu0 0
        %604 = vmatprep.subr.bf16.mxu0 0
        %605 = vmatpush1.bf16.msra.mxu0 0
        %606 = vmatprep.subr.bf16.mxu0 0
        %607 = vmatpush1.bf16.msra.mxu0 0
        %608 = vmatprep.subr.bf16.mxu0 0
        %609 = vmatpush1.bf16.msra.mxu0 0
        %610 = vmatprep.subr.bf16.mxu0 0
        %611 = vmatpush1.bf16.msra.mxu0 %v524
        %612 = vmatprep.subr.bf16.mxu0 0
        %613 = vmatpush1.bf16.msra.mxu0 %v523
        %614 = vmatprep.subr.bf16.mxu0 0
        %615 = vmatpush2.bf16.msra.mxu0 0
        %616 = vmatprep.subr.bf16.mxu0 0
        %617 = vmatpush2.bf16.msra.mxu0 0
        %618 = vmatprep.subr.bf16.mxu0 0
        %619 = vmatpush2.bf16.msra.mxu0 0
        %620 = vmatprep.subr.bf16.mxu0 0
        %621 = vmatpush2.bf16.msra.mxu0 0
        %622 = vmatprep.subr.bf16.mxu0 0
        %623 = vmatpush2.bf16.msra.mxu0 0
        %624 = vmatprep.subr.bf16.mxu0 0
        %625 = vmatpush2.bf16.msra.mxu0 0
        %626 = vmatprep.subr.bf16.mxu0 0
        %627 = vmatpush2.bf16.msra.mxu0 0
        %628 = vmatprep.subr.bf16.mxu0 0
        %629 = vmatpush2.bf16.msra.mxu0 0
        %630 = vmatprep.mubr.bf16.mxu0 0
        %631 = vmatmul.mubr.bf16.gmra.mxu0 %v596
        %v632 = vpop.f32.mrf.mxu0
        %v633 = vadd.f32 0.0, %v632
        %v634 = vpop.f32.mrf.mxu0
        %v635 = vpop.f32.mrf.mxu0
        %v636 = vpop.f32.mrf.mxu0
        %637 = vdwg.mxu0
        %v638 = vadd.f32 %v492, %v633
        %v639 = vmul.f32 %v638, 0.5
        %v640 = vtanh.pop %v639
        %v641 = vadd.f32 %v640, 1.0
        %v642 = vmul.f32 %v641, 0.5
        %v643 = vtanh.pop %v638
        %v644 = vmul.f32 %v642, %v584
        %646 = vrot.lane.b32.xlu0 %v643, 64
        %v647 = vpop.permute.xlu0 %646
        %v649 = vmul.f32 %v642, %v647
        %651 = vrot.lane.b32.xlu0 %v649, 32
        %v652 = vpop.permute.xlu0 %651
        %v654 = vadd.f32 %v644, %v652
        %v655 = vtanh.pop %v654
        %657 = vrot.lane.b32.xlu0 %v655, 64
        %v658 = vpop.permute.xlu0 %657
        %v660 = vmul.f32 %v642, %v658
        %v661 = vpack.c.bf16 %v660, %v660
        %663 = vrot.lane.b32.xlu0 %v661, 32
        %v664 = vpop.permute.xlu0 %663
        %v666 = vsel %vm441, %v664, 0
        %668 = vmatprep.subr.bf16.mxu0 0
        %669 = vmatpush1.bf16.msra.mxu0 0
        %670 = vmatprep.subr.bf16.mxu0 0
        %671 = vmatpush1.bf16.msra.mxu0 0
        %672 = vmatprep.subr.bf16.mxu0 0
        %673 = vmatpush1.bf16.msra.mxu0 0
        %674 = vmatprep.subr.bf16.mxu0 0
        %675 = vmatpush1.bf16.msra.mxu0 0
        %676 = vmatprep.subr.bf16.mxu0 0
        %677 = vmatpush1.bf16.msra.mxu0 0
        %678 = vmatprep.subr.bf16.mxu0 0
        %679 = vmatpush1.bf16.msra.mxu0 0
        %680 = vmatprep.subr.bf16.mxu0 0
        %681 = vmatpush1.bf16.msra.mxu0 %v524
        %682 = vmatprep.subr.bf16.mxu0 0
        %683 = vmatpush1.bf16.msra.mxu0 %v523
        %684 = vmatprep.subr.bf16.mxu0 0
        %685 = vmatpush2.bf16.msra.mxu0 0
        %686 = vmatprep.subr.bf16.mxu0 0
        %687 = vmatpush2.bf16.msra.mxu0 0
        %688 = vmatprep.subr.bf16.mxu0 0
        %689 = vmatpush2.bf16.msra.mxu0 0
        %690 = vmatprep.subr.bf16.mxu0 0
        %691 = vmatpush2.bf16.msra.mxu0 0
        %692 = vmatprep.subr.bf16.mxu0 0
        %693 = vmatpush2.bf16.msra.mxu0 0
        %694 = vmatprep.subr.bf16.mxu0 0
        %695 = vmatpush2.bf16.msra.mxu0 0
        %696 = vmatprep.subr.bf16.mxu0 0
        %697 = vmatpush2.bf16.msra.mxu0 0
        %698 = vmatprep.subr.bf16.mxu0 0
        %699 = vmatpush2.bf16.msra.mxu0 0
        %700 = vmatprep.mubr.bf16.mxu0 0
        %701 = vmatmul.mubr.bf16.gmra.mxu0 %v666
        %v702 = vpop.f32.mrf.mxu0
        %v703 = vadd.f32 0.0, %v702
        %v704 = vpop.f32.mrf.mxu0
        %v705 = vpop.f32.mrf.mxu0
        %v706 = vpop.f32.mrf.mxu0
        %707 = vdwg.mxu0
        %v708 = vadd.f32 %v497, %v703
        %v709 = vmul.f32 %v708, 0.5
        %v710 = vtanh.pop %v709
        %v711 = vadd.f32 %v710, 1.0
        %v712 = vmul.f32 %v711, 0.5
        %v713 = vtanh.pop %v708
        %v714 = vmul.f32 %v712, %v654
        %716 = vrot.lane.b32.xlu0 %v713, 64
        %v717 = vpop.permute.xlu0 %716
        %v719 = vmul.f32 %v712, %v717
        %721 = vrot.lane.b32.xlu0 %v719, 32
        %v722 = vpop.permute.xlu0 %721
        %v724 = vadd.f32 %v714, %v722
        %v725 = vtanh.pop %v724
        %727 = vrot.lane.b32.xlu0 %v725, 64
        %v728 = vpop.permute.xlu0 %727
        %v730 = vmul.f32 %v712, %v728
        %v731 = vpack.c.bf16 %v730, %v730
        %733 = vrot.lane.b32.xlu0 %v731, 32
        %v734 = vpop.permute.xlu0 %733
        %v736 = vsel %vm441, %v734, 0
        %738 = vmatprep.subr.bf16.mxu0 0
        %739 = vmatpush1.bf16.msra.mxu0 0
        %740 = vmatprep.subr.bf16.mxu0 0
        %741 = vmatpush1.bf16.msra.mxu0 0
        %742 = vmatprep.subr.bf16.mxu0 0
        %743 = vmatpush1.bf16.msra.mxu0 0
        %744 = vmatprep.subr.bf16.mxu0 0
        %745 = vmatpush1.bf16.msra.mxu0 0
        %746 = vmatprep.subr.bf16.mxu0 0
        %747 = vmatpush1.bf16.msra.mxu0 0
        %748 = vmatprep.subr.bf16.mxu0 0
        %749 = vmatpush1.bf16.msra.mxu0 0
        %750 = vmatprep.subr.bf16.mxu0 0
        %751 = vmatpush1.bf16.msra.mxu0 %v524
        %752 = vmatprep.subr.bf16.mxu0 0
        %753 = vmatpush1.bf16.msra.mxu0 %v523
        %754 = vmatprep.subr.bf16.mxu0 0
        %755 = vmatpush2.bf16.msra.mxu0 0
        %756 = vmatprep.subr.bf16.mxu0 0
        %757 = vmatpush2.bf16.msra.mxu0 0
        %758 = vmatprep.subr.bf16.mxu0 0
        %759 = vmatpush2.bf16.msra.mxu0 0
        %760 = vmatprep.subr.bf16.mxu0 0
        %761 = vmatpush2.bf16.msra.mxu0 0
        %762 = vmatprep.subr.bf16.mxu0 0
        %763 = vmatpush2.bf16.msra.mxu0 0
        %764 = vmatprep.subr.bf16.mxu0 0
        %765 = vmatpush2.bf16.msra.mxu0 0
        %766 = vmatprep.subr.bf16.mxu0 0
        %767 = vmatpush2.bf16.msra.mxu0 0
        %768 = vmatprep.subr.bf16.mxu0 0
        %769 = vmatpush2.bf16.msra.mxu0 0
        %770 = vmatprep.mubr.bf16.mxu0 0
        %771 = vmatmul.mubr.bf16.gmra.mxu0 %v736
        %v772 = vpop.f32.mrf.mxu0
        %v773 = vadd.f32 0.0, %v772
        %v774 = vpop.f32.mrf.mxu0
        %v775 = vpop.f32.mrf.mxu0
        %v776 = vpop.f32.mrf.mxu0
        %777 = vdwg.mxu0
        %v778 = vadd.f32 %v500, %v773
        %v779 = vmul.f32 %v778, 0.5
        %v780 = vtanh.pop %v779
        %v781 = vadd.f32 %v780, 1.0
        %v782 = vmul.f32 %v781, 0.5
        %v783 = vtanh.pop %v778
        %v784 = vmul.f32 %v782, %v724
        %786 = vrot.lane.b32.xlu0 %v783, 64
        %v787 = vpop.permute.xlu0 %786
        %v789 = vmul.f32 %v782, %v787
        %791 = vrot.lane.b32.xlu0 %v789, 32
        %v792 = vpop.permute.xlu0 %791
        %v794 = vadd.f32 %v784, %v792
        %v795 = vtanh.pop %v794
        %797 = vrot.lane.b32.xlu0 %v795, 64
        %v798 = vpop.permute.xlu0 %797
        %v800 = vmul.f32 %v782, %v798
        %v801 = vpack.c.bf16 %v800, %v800
        %803 = vrot.lane.b32.xlu0 %v801, 32
        %v804 = vpop.permute.xlu0 %803
        %v806 = vsel %vm441, %v804, 0
        %808 = vmatprep.subr.bf16.mxu0 0
        %809 = vmatpush1.bf16.msra.mxu0 0
        %810 = vmatprep.subr.bf16.mxu0 0
        %811 = vmatpush1.bf16.msra.mxu0 0
        %812 = vmatprep.subr.bf16.mxu0 0
        %813 = vmatpush1.bf16.msra.mxu0 0
        %814 = vmatprep.subr.bf16.mxu0 0
        %815 = vmatpush1.bf16.msra.mxu0 0
        %816 = vmatprep.subr.bf16.mxu0 0
        %817 = vmatpush1.bf16.msra.mxu0 0
        %818 = vmatprep.subr.bf16.mxu0 0
        %819 = vmatpush1.bf16.msra.mxu0 0
        %820 = vmatprep.subr.bf16.mxu0 0
        %821 = vmatpush1.bf16.msra.mxu0 %v524
        %822 = vmatprep.subr.bf16.mxu0 0
        %823 = vmatpush1.bf16.msra.mxu0 %v523
        %824 = vmatprep.subr.bf16.mxu0 0
        %825 = vmatpush2.bf16.msra.mxu0 0
        %826 = vmatprep.subr.bf16.mxu0 0
        %827 = vmatpush2.bf16.msra.mxu0 0
        %828 = vmatprep.subr.bf16.mxu0 0
        %829 = vmatpush2.bf16.msra.mxu0 0
        %830 = vmatprep.subr.bf16.mxu0 0
        %831 = vmatpush2.bf16.msra.mxu0 0
        %832 = vmatprep.subr.bf16.mxu0 0
        %833 = vmatpush2.bf16.msra.mxu0 0
        %834 = vmatprep.subr.bf16.mxu0 0
        %835 = vmatpush2.bf16.msra.mxu0 0
        %836 = vmatprep.subr.bf16.mxu0 0
        %837 = vmatpush2.bf16.msra.mxu0 0
        %838 = vmatprep.subr.bf16.mxu0 0
        %839 = vmatpush2.bf16.msra.mxu0 0
        %840 = vmatprep.mubr.bf16.mxu0 0
        %841 = vmatmul.mubr.bf16.gmra.mxu0 %v806
        %v842 = vpop.f32.mrf.mxu0
        %v843 = vadd.f32 0.0, %v842
        %v844 = vpop.f32.mrf.mxu0
        %v845 = vpop.f32.mrf.mxu0
        %v846 = vpop.f32.mrf.mxu0
        %847 = vdwg.mxu0
        %v848 = vadd.f32 %v505, %v843
        %v849 = vmul.f32 %v848, 0.5
        %v850 = vtanh.pop %v849
        %v851 = vadd.f32 %v850, 1.0
        %v852 = vmul.f32 %v851, 0.5
        %v853 = vtanh.pop %v848
        %v854 = vmul.f32 %v852, %v794
        %856 = vrot.lane.b32.xlu0 %v853, 64
        %v857 = vpop.permute.xlu0 %856
        %v859 = vmul.f32 %v852, %v857
        %861 = vrot.lane.b32.xlu0 %v859, 32
        %v862 = vpop.permute.xlu0 %861
        %v864 = vadd.f32 %v854, %v862
        %v865 = vtanh.pop %v864
        %867 = vrot.lane.b32.xlu0 %v865, 64
        %v868 = vpop.permute.xlu0 %867
        %v870 = vmul.f32 %v852, %v868
        %v871 = vpack.c.bf16 %v870, %v870
        %873 = vrot.lane.b32.xlu0 %v871, 32
        %v874 = vpop.permute.xlu0 %873
        %v876 = vsel %vm441, %v874, 0
        %878 = vmatprep.subr.bf16.mxu0 0
        %879 = vmatpush1.bf16.msra.mxu0 0
        %880 = vmatprep.subr.bf16.mxu0 0
        %881 = vmatpush1.bf16.msra.mxu0 0
        %882 = vmatprep.subr.bf16.mxu0 0
        %883 = vmatpush1.bf16.msra.mxu0 0
        %884 = vmatprep.subr.bf16.mxu0 0
        %885 = vmatpush1.bf16.msra.mxu0 0
        %886 = vmatprep.subr.bf16.mxu0 0
        %887 = vmatpush1.bf16.msra.mxu0 0
        %888 = vmatprep.subr.bf16.mxu0 0
        %889 = vmatpush1.bf16.msra.mxu0 0
        %890 = vmatprep.subr.bf16.mxu0 0
        %891 = vmatpush1.bf16.msra.mxu0 %v524
        %892 = vmatprep.subr.bf16.mxu0 0
        %893 = vmatpush1.bf16.msra.mxu0 %v523
        %894 = vmatprep.subr.bf16.mxu0 0
        %895 = vmatpush2.bf16.msra.mxu0 0
        %896 = vmatprep.subr.bf16.mxu0 0
        %897 = vmatpush2.bf16.msra.mxu0 0
        %898 = vmatprep.subr.bf16.mxu0 0
        %899 = vmatpush2.bf16.msra.mxu0 0
        %900 = vmatprep.subr.bf16.mxu0 0
        %901 = vmatpush2.bf16.msra.mxu0 0
        %902 = vmatprep.subr.bf16.mxu0 0
        %903 = vmatpush2.bf16.msra.mxu0 0
        %904 = vmatprep.subr.bf16.mxu0 0
        %905 = vmatpush2.bf16.msra.mxu0 0
        %906 = vmatprep.subr.bf16.mxu0 0
        %907 = vmatpush2.bf16.msra.mxu0 0
        %908 = vmatprep.subr.bf16.mxu0 0
        %909 = vmatpush2.bf16.msra.mxu0 0
        %910 = vmatprep.mubr.bf16.mxu0 0
        %911 = vmatmul.mubr.bf16.gmra.mxu0 %v876
        %v912 = vpop.f32.mrf.mxu0
        %v913 = vadd.f32 0.0, %v912
        %v914 = vpop.f32.mrf.mxu0
        %v915 = vpop.f32.mrf.mxu0
        %v916 = vpop.f32.mrf.mxu0
        %917 = vdwg.mxu0
        %v918 = vadd.f32 %v508, %v913
        %v919 = vmul.f32 %v918, 0.5
        %v920 = vtanh.pop %v919
        %v921 = vadd.f32 %v920, 1.0
        %v922 = vmul.f32 %v921, 0.5
        %v923 = vtanh.pop %v918
        %v924 = vmul.f32 %v922, %v864
        %926 = vrot.lane.b32.xlu0 %v923, 64
        %v927 = vpop.permute.xlu0 %926
        %v929 = vmul.f32 %v922, %v927
        %931 = vrot.lane.b32.xlu0 %v929, 32
        %v932 = vpop.permute.xlu0 %931
        %v934 = vadd.f32 %v924, %v932
        %v935 = vtanh.pop %v934
        %937 = vrot.lane.b32.xlu0 %v935, 64
        %v938 = vpop.permute.xlu0 %937
        %v940 = vmul.f32 %v922, %v938
        %v941 = vpack.c.bf16 %v940, %v940
        %943 = vrot.lane.b32.xlu0 %v941, 32
        %v944 = vpop.permute.xlu0 %943
        %v946 = vsel %vm441, %v944, 0
        %948 = vmatprep.subr.bf16.mxu0 0
        %949 = vmatpush1.bf16.msra.mxu0 0
        %950 = vmatprep.subr.bf16.mxu0 0
        %951 = vmatpush1.bf16.msra.mxu0 0
        %952 = vmatprep.subr.bf16.mxu0 0
        %953 = vmatpush1.bf16.msra.mxu0 0
        %954 = vmatprep.subr.bf16.mxu0 0
        %955 = vmatpush1.bf16.msra.mxu0 0
        %956 = vmatprep.subr.bf16.mxu0 0
        %957 = vmatpush1.bf16.msra.mxu0 0
        %958 = vmatprep.subr.bf16.mxu0 0
        %959 = vmatpush1.bf16.msra.mxu0 0
        %960 = vmatprep.subr.bf16.mxu0 0
        %961 = vmatpush1.bf16.msra.mxu0 %v524
        %962 = vmatprep.subr.bf16.mxu0 0
        %963 = vmatpush1.bf16.msra.mxu0 %v523
        %964 = vmatprep.subr.bf16.mxu0 0
        %965 = vmatpush2.bf16.msra.mxu0 0
        %966 = vmatprep.subr.bf16.mxu0 0
        %967 = vmatpush2.bf16.msra.mxu0 0
        %968 = vmatprep.subr.bf16.mxu0 0
        %969 = vmatpush2.bf16.msra.mxu0 0
        %970 = vmatprep.subr.bf16.mxu0 0
        %971 = vmatpush2.bf16.msra.mxu0 0
        %972 = vmatprep.subr.bf16.mxu0 0
        %973 = vmatpush2.bf16.msra.mxu0 0
        %974 = vmatprep.subr.bf16.mxu0 0
        %975 = vmatpush2.bf16.msra.mxu0 0
        %976 = vmatprep.subr.bf16.mxu0 0
        %977 = vmatpush2.bf16.msra.mxu0 0
        %978 = vmatprep.subr.bf16.mxu0 0
        %979 = vmatpush2.bf16.msra.mxu0 0
        %980 = vmatprep.mubr.bf16.mxu0 0
        %981 = vmatmul.mubr.bf16.gmra.mxu0 %v946
        %v982 = vpop.f32.mrf.mxu0
        %v983 = vadd.f32 0.0, %v982
        %v984 = vpop.f32.mrf.mxu0
        %v985 = vpop.f32.mrf.mxu0
        %v986 = vpop.f32.mrf.mxu0
        %987 = vdwg.mxu0
        %v988 = vadd.f32 %v513, %v983
        %v989 = vmul.f32 %v988, 0.5
        %v990 = vtanh.pop %v989
        %v991 = vadd.f32 %v990, 1.0
        %v992 = vmul.f32 %v991, 0.5
        %v993 = vtanh.pop %v988
        %v994 = vmul.f32 %v992, %v934
        %996 = vrot.lane.b32.xlu0 %v993, 64
        %v997 = vpop.permute.xlu0 %996
        %v999 = vmul.f32 %v992, %v997
        %1001 = vrot.lane.b32.xlu0 %v999, 32
        %v1002 = vpop.permute.xlu0 %1001
        %v1004 = vadd.f32 %v994, %v1002
        %v1005 = vtanh.pop %v1004
        %1007 = vrot.lane.b32.xlu0 %v1005, 64
        %v1008 = vpop.permute.xlu0 %1007
        %v1010 = vmul.f32 %v992, %v1008
        %v1011 = vpack.c.bf16 %v1010, %v1010
        %1013 = vrot.lane.b32.xlu0 %v1011, 32
        %v1014 = vpop.permute.xlu0 %1013
        %v1016 = vsel %vm441, %v1014, 0
        %1018 = vmatprep.subr.bf16.mxu0 0
        %1019 = vmatpush1.bf16.msra.mxu0 0
        %1020 = vmatprep.subr.bf16.mxu0 0
        %1021 = vmatpush1.bf16.msra.mxu0 0
        %1022 = vmatprep.subr.bf16.mxu0 0
        %1023 = vmatpush1.bf16.msra.mxu0 0
        %1024 = vmatprep.subr.bf16.mxu0 0
        %1025 = vmatpush1.bf16.msra.mxu0 0
        %1026 = vmatprep.subr.bf16.mxu0 0
        %1027 = vmatpush1.bf16.msra.mxu0 0
        %1028 = vmatprep.subr.bf16.mxu0 0
        %1029 = vmatpush1.bf16.msra.mxu0 0
        %1030 = vmatprep.subr.bf16.mxu0 0
        %1031 = vmatpush1.bf16.msra.mxu0 %v524
        %1032 = vmatprep.subr.bf16.mxu0 0
        %1033 = vmatpush1.bf16.msra.mxu0 %v523
        %1034 = vmatprep.subr.bf16.mxu0 0
        %1035 = vmatpush2.bf16.msra.mxu0 0
        %1036 = vmatprep.subr.bf16.mxu0 0
        %1037 = vmatpush2.bf16.msra.mxu0 0
        %1038 = vmatprep.subr.bf16.mxu0 0
        %1039 = vmatpush2.bf16.msra.mxu0 0
        %1040 = vmatprep.subr.bf16.mxu0 0
        %1041 = vmatpush2.bf16.msra.mxu0 0
        %1042 = vmatprep.subr.bf16.mxu0 0
        %1043 = vmatpush2.bf16.msra.mxu0 0
        %1044 = vmatprep.subr.bf16.mxu0 0
        %1045 = vmatpush2.bf16.msra.mxu0 0
        %1046 = vmatprep.subr.bf16.mxu0 0
        %1047 = vmatpush2.bf16.msra.mxu0 0
        %1048 = vmatprep.subr.bf16.mxu0 0
        %1049 = vmatpush2.bf16.msra.mxu0 0
        %1050 = vmatprep.mubr.bf16.mxu0 0
        %1051 = vmatmul.mubr.bf16.gmra.mxu0 %v1016
        %v1052 = vpop.f32.mrf.mxu0
        %v1053 = vadd.f32 0.0, %v1052
        %v1054 = vpop.f32.mrf.mxu0
        %v1055 = vpop.f32.mrf.mxu0
        %v1056 = vpop.f32.mrf.mxu0
        %1057 = vdwg.mxu0
        %v1058 = vadd.f32 %v516, %v1053
        %v1059 = vmul.f32 %v1058, 0.5
        %v1060 = vtanh.pop %v1059
        %v1061 = vadd.f32 %v1060, 1.0
        %v1062 = vmul.f32 %v1061, 0.5
        %v1063 = vtanh.pop %v1058
        %v1064 = vmul.f32 %v1062, %v1004
        %1066 = vrot.lane.b32.xlu0 %v1063, 64
        %v1067 = vpop.permute.xlu0 %1066
        %v1069 = vmul.f32 %v1062, %v1067
        %1071 = vrot.lane.b32.xlu0 %v1069, 32
        %v1072 = vpop.permute.xlu0 %1071
        %v1074 = vadd.f32 %v1064, %v1072
        %v1075 = vtanh.pop %v1074
        %1077 = vrot.lane.b32.xlu0 %v1075, 64
        %v1078 = vpop.permute.xlu0 %1077
        %v1080 = vmul.f32 %v1062, %v1078
        %v1081 = vpack.c.bf16 %v660, %v590
        %v1082 = vpack.c.bf16 %v800, %v730
        %v1083 = vpack.c.bf16 %v940, %v870
        %v1084 = vpack.c.bf16 %v1080, %v1010
        %v1085 = vld [vmem:[%s5] sm:$0xff]
        %v1086 = vld [vmem:[%s5 + $0x8] sm:$0xff]
        %v1087 = vld [vmem:[%s5 + $0x10] sm:$0xff]
        %v1088 = vld [vmem:[%s5 + $0x18] sm:$0xff]
        %v1089 = vpack.c.bf16 %v1086, %v1085
        %v1090 = vpack.c.bf16 %v1088, %v1087
        %v1091 = vld [vmem:[%s6] sm:$0x1]
        %v1093 = vlaneseq
        %v1094 = vshrl.u32 %v1093, 7
        %v1095 = vsub.s32 0, %v1094
        %v1096 = vrot.slane %v1091, %v1095
        %1102 = vrot.lane.b32.xlu0 %v1081, 32
        %v1103 = vpop.permute.xlu0 %1102
        %1104 = vrot.lane.b32.xlu0 %v1082, 32
        %v1105 = vpop.permute.xlu0 %1104
        %1106 = vrot.lane.b32.xlu0 %v1083, 32
        %v1107 = vpop.permute.xlu0 %1106
        %1108 = vrot.lane.b32.xlu0 %v1084, 32
        %v1109 = vpop.permute.xlu0 %1108
        %v1111 = vsel %vm441, %v1103, 0
        %v1114 = vsel %vm441, %v1105, 0
        %v1117 = vsel %vm441, %v1107, 0
        %v1120 = vsel %vm441, %v1109, 0
        %1122 = vmatprep.subr.bf16.mxu0 0
        %1123 = vmatpush1.bf16.msra.mxu0 0
        %1124 = vmatprep.subr.bf16.mxu0 0
        %1125 = vmatpush1.bf16.msra.mxu0 0
        %1126 = vmatprep.subr.bf16.mxu0 0
        %1127 = vmatpush1.bf16.msra.mxu0 0
        %1128 = vmatprep.subr.bf16.mxu0 0
        %1129 = vmatpush1.bf16.msra.mxu0 0
        %1130 = vmatprep.subr.bf16.mxu0 0
        %1131 = vmatpush1.bf16.msra.mxu0 0
        %1132 = vmatprep.subr.bf16.mxu0 0
        %1133 = vmatpush1.bf16.msra.mxu0 0
        %1134 = vmatprep.subr.bf16.mxu0 0
        %1135 = vmatpush1.bf16.msra.mxu0 %v1090
        %1136 = vmatprep.subr.bf16.mxu0 0
        %1137 = vmatpush1.bf16.msra.mxu0 %v1089
        %1138 = vmatprep.subr.bf16.mxu0 0
        %1139 = vmatpush2.bf16.msra.mxu0 0
        %1140 = vmatprep.subr.bf16.mxu0 0
        %1141 = vmatpush2.bf16.msra.mxu0 0
        %1142 = vmatprep.subr.bf16.mxu0 0
        %1143 = vmatpush2.bf16.msra.mxu0 0
        %1144 = vmatprep.subr.bf16.mxu0 0
        %1145 = vmatpush2.bf16.msra.mxu0 0
        %1146 = vmatprep.subr.bf16.mxu0 0
        %1147 = vmatpush2.bf16.msra.mxu0 0
        %1148 = vmatprep.subr.bf16.mxu0 0
        %1149 = vmatpush2.bf16.msra.mxu0 0
        %1150 = vmatprep.subr.bf16.mxu0 0
        %1151 = vmatpush2.bf16.msra.mxu0 0
        %1152 = vmatprep.subr.bf16.mxu0 0
        %1153 = vmatpush2.bf16.msra.mxu0 0
        %1154 = vmatprep.mubr.bf16.mxu0 0
        %1155 = vmatmul.mubr.bf16.gmra.mxu0 %v1111
        %v1156 = vpop.f32.mrf.mxu0
        %v1157 = vadd.f32 %v1096, %v1156
        %v1158 = vpop.f32.mrf.mxu0
        %v1159 = vpop.f32.mrf.mxu0
        %v1160 = vadd.f32 %v1096, %v1159
        %v1161 = vpop.f32.mrf.mxu0
        %1162 = vmatprep.mubr.bf16.mxu0 0
        %1163 = vmatmul.mubr.bf16.gmra.mxu0 %v1114
        %v1164 = vpop.f32.mrf.mxu0
        %v1165 = vadd.f32 %v1096, %v1164
        %v1166 = vpop.f32.mrf.mxu0
        %v1167 = vpop.f32.mrf.mxu0
        %v1168 = vadd.f32 %v1096, %v1167
        %v1169 = vpop.f32.mrf.mxu0
        %1170 = vmatprep.mubr.bf16.mxu0 0
        %1171 = vmatmul.mubr.bf16.gmra.mxu0 %v1117
        %v1172 = vpop.f32.mrf.mxu0
        %v1173 = vadd.f32 %v1096, %v1172
        %v1174 = vpop.f32.mrf.mxu0
        %v1175 = vpop.f32.mrf.mxu0
        %v1176 = vadd.f32 %v1096, %v1175
        %v1177 = vpop.f32.mrf.mxu0
        %1178 = vmatprep.mubr.bf16.mxu0 0
        %1179 = vmatmul.mubr.bf16.gmra.mxu0 %v1120
        %v1180 = vpop.f32.mrf.mxu0
        %v1181 = vadd.f32 %v1096, %v1180
        %v1182 = vpop.f32.mrf.mxu0
        %v1183 = vpop.f32.mrf.mxu0
        %v1184 = vadd.f32 %v1096, %v1183
        %v1185 = vpop.f32.mrf.mxu0
        %1186 = vdwg.mxu0
        %1187 = vmax.xlane.f32.xlu0 %v1157
        %v1188 = vpop.xlane.xlu0 %1187
        %1189 = vmax.xlane.f32.xlu0 %v1160
        %v1190 = vpop.xlane.xlu0 %1189
        %1191 = vmax.xlane.f32.xlu0 %v1165
        %v1192 = vpop.xlane.xlu0 %1191
        %1193 = vmax.xlane.f32.xlu0 %v1168
        %v1194 = vpop.xlane.xlu0 %1193
        %1195 = vmax.xlane.f32.xlu0 %v1173
        %v1196 = vpop.xlane.xlu0 %1195
        %1197 = vmax.xlane.f32.xlu0 %v1176
        %v1198 = vpop.xlane.xlu0 %1197
        %1199 = vmax.xlane.f32.xlu0 %v1181
        %v1200 = vpop.xlane.xlu0 %1199
        %1201 = vmax.xlane.f32.xlu0 %v1184
        %v1202 = vpop.xlane.xlu0 %1201
        %v1203 = vsub.f32 %v1157, %v1188
        %v1204 = vsub.f32 %v1160, %v1190
        %v1205 = vsub.f32 %v1165, %v1192
        %v1206 = vsub.f32 %v1168, %v1194
        %v1207 = vsub.f32 %v1173, %v1196
        %v1208 = vsub.f32 %v1176, %v1198
        %v1209 = vsub.f32 %v1181, %v1200
        %v1210 = vsub.f32 %v1184, %v1202
        %v1211 = vmul.f32 %v1203, 1.442695
        %v1212 = vpow.pop %v1211
        %v1213 = vmul.f32 %v1204, 1.442695
        %v1214 = vpow.pop %v1213
        %v1215 = vmul.f32 %v1205, 1.442695
        %v1216 = vpow.pop %v1215
        %v1217 = vmul.f32 %v1206, 1.442695
        %v1218 = vpow.pop %v1217
        %v1219 = vmul.f32 %v1207, 1.442695
        %v1220 = vpow.pop %v1219
        %v1221 = vmul.f32 %v1208, 1.442695
        %v1222 = vpow.pop %v1221
        %v1223 = vmul.f32 %v1209, 1.442695
        %v1224 = vpow.pop %v1223
        %v1225 = vmul.f32 %v1210, 1.442695
        %v1226 = vpow.pop %v1225
        %1227 = vadd.xlane.f32.xlu0 %v1212
        %v1228 = vpop.xlane.xlu0 %1227
        %1229 = vadd.xlane.f32.xlu0 %v1214
        %v1230 = vpop.xlane.xlu0 %1229
        %1231 = vadd.xlane.f32.xlu0 %v1216
        %v1232 = vpop.xlane.xlu0 %1231
        %1233 = vadd.xlane.f32.xlu0 %v1218
        %v1234 = vpop.xlane.xlu0 %1233
        %1235 = vadd.xlane.f32.xlu0 %v1220
        %v1236 = vpop.xlane.xlu0 %1235
        %1237 = vadd.xlane.f32.xlu0 %v1222
        %v1238 = vpop.xlane.xlu0 %1237
        %1239 = vadd.xlane.f32.xlu0 %v1224
        %v1240 = vpop.xlane.xlu0 %1239
        %1241 = vadd.xlane.f32.xlu0 %v1226
        %v1242 = vpop.xlane.xlu0 %1241
        %v1243 = vlog2.pop %v1228
        %v1244 = vmul.f32 %v1243, 0.6931472
        %v1245 = vlog2.pop %v1230
        %v1246 = vmul.f32 %v1245, 0.6931472
        %v1247 = vlog2.pop %v1232
        %v1248 = vmul.f32 %v1247, 0.6931472
        %v1249 = vlog2.pop %v1234
        %v1250 = vmul.f32 %v1249, 0.6931472
        %v1251 = vlog2.pop %v1236
        %v1252 = vmul.f32 %v1251, 0.6931472
        %v1253 = vlog2.pop %v1238
        %v1254 = vmul.f32 %v1253, 0.6931472
        %v1255 = vlog2.pop %v1240
        %v1256 = vmul.f32 %v1255, 0.6931472
        %v1257 = vlog2.pop %v1242
        %v1258 = vmul.f32 %v1257, 0.6931472
        %v1259 = vadd.f32 %v1188, %v1244
        %v1260 = vadd.f32 %v1190, %v1246
        %v1261 = vadd.f32 %v1192, %v1248
        %v1262 = vadd.f32 %v1194, %v1250
        %v1263 = vadd.f32 %v1196, %v1252
        %v1264 = vadd.f32 %v1198, %v1254
        %v1265 = vadd.f32 %v1200, %v1256
        %v1266 = vadd.f32 %v1202, %v1258
        %v1267 = vsub.f32 %v1157, %v1259
        %v1268 = vsub.f32 %v1160, %v1260
        %v1269 = vsub.f32 %v1165, %v1261
        %v1270 = vsub.f32 %v1168, %v1262
        %v1271 = vsub.f32 %v1173, %v1263
        %v1272 = vsub.f32 %v1176, %v1264
        %v1273 = vsub.f32 %v1181, %v1265
        %v1274 = vsub.f32 %v1184, %v1266
        %1275 = vst [vmem:[%s272] sm:$0xff] %v1267
        %1276 = vst [vmem:[%s272 + $0x8] sm:$0xff] %v1268
        %1277 = vst [vmem:[%s272 + $0x10] sm:$0xff] %v1269
        %1278 = vst [vmem:[%s272 + $0x18] sm:$0xff] %v1270
        %1279 = vst [vmem:[%s272 + $0x20] sm:$0xff] %v1271
        %1280 = vst [vmem:[%s272 + $0x28] sm:$0xff] %v1272
        %1281 = vst [vmem:[%s272 + $0x30] sm:$0xff] %v1273
        %1282 = vst [vmem:[%s272 + $0x38] sm:$0xff] %v1274
        %s1283 = sand.u32 %s181, 1
        %s1284 = scalar_lea.sflag [#allocation3], %s1283
        %s1285 = sand.u32 %s181, 1
        %s1286 = smul.addr %s1285, 64
        %s1287 = scalar_lea.vmem [#allocation2], %s1286
        // Predicated region
        $region49: #{tpu_custom_call.1} parent=47 // pred_check
          %p1288 = pneg %p191
        $region50: #{tpu_custom_call.1} parent=47 // pred_check_branch
          %1290 = sbr.rel (%p1288) target = $region52
        $region51: #{tpu_custom_call.1} parent=47 // pred_region
          %s1291 = smul.u32 8, %s21
          %s1293 = ssub.s32 1024, 1024
          %1294 = vsyncadd %s1284, %s1293
          %s1295 = smul.addr %s1291, 128
          %s1296 = scalar_lea.hbm %s7, %s1295
          %s1297 = sshll.u32 %s1287, 4
          %s1298 = int_to_ptr.vmem [resolvable:$true] %s1297
          %1303 = dma.vmem_to_hbm [thread:$0]  %s1298, 1024, %s1296, %s1284, 128, 128, 8
        $region52: #{tpu_custom_call.1} parent=47 // pred_fallthru
          _
      $region48: #{tpu_custom_call.1} parent=5 // pred_fallthru
        _
      %p1304 = scmp.le.s32.totalorder 2, %s16
      // Predicated region
      $region53: #{tpu_custom_call.1} parent=5 // pred_check
        %p1305 = pneg %p1304
      $region54: #{tpu_custom_call.1} parent=5 // pred_check_branch
        %1307 = sbr.rel (%p1305) target = $region56
      $region55: #{tpu_custom_call.1} parent=5 // pred_region
        %s1308 = ssub.s32 %s16, 2
        // Predicated region
        $region57: #{tpu_custom_call.1} parent=55 // pred_check
          %p1309 = pneg %p197
        $region58: #{tpu_custom_call.1} parent=55 // pred_check_branch
          %1311 = sbr.rel (%p1309) target = $region60
        $region59: #{tpu_custom_call.1} parent=55 // pred_region
          %s1312 = sand.u32 %s182, 1
          %s1313 = scalar_lea.sflag [#allocation3], %s1312
          %s1314 = sand.u32 %s182, 1
          %s1315 = smul.addr %s1314, 64
          %s1316 = scalar_lea.vmem [#allocation2], %s1315
          %1317 = dma.done %s1313, 1024
        $region60: #{tpu_custom_call.1} parent=55 // pred_fallthru
          _
      $region56: #{tpu_custom_call.1} parent=5 // pred_fallthru
        _
    $region6: #{tpu_custom_call.1} parent=1 // loop_footer
      %s20 = sadd.s32 1, %s16
    $region7: #{tpu_custom_call.1} parent=1 // loop_footer_branch
      %15 = sbr.rel target = $region3
    $region8: #{tpu_custom_call.1} parent=1 // loop_exit
      _
    %1318 = vsyncpa [#allocation3], 1
    %s1319 = scalar_lea.sflag [#allocation3], 1
    %1320 = vsyncpa %s1319, 1

</llo_original>
